<compile_context>
chip_gen: v7x
topology: tpu7x:2x2x1
jax: 0.10.0
libtpu: 0.0.40
codegen_flags: <defaults>
</compile_context>

<pallas_src>
import functools

import jax
import jax.numpy as jnp
from jax import lax
from jax.experimental import pallas as pl
from jax.experimental.pallas import tpu as pltpu

_LN_EPS = 1e-5
_VMEM_LIMIT = 64 * 1024 * 1024


# ----------------------------------------------------------------------------
# helpers
# ----------------------------------------------------------------------------
def _choose_row_tile(n, target=512):
    """Row tile + padded row count.  tile is full-extent (n<=target) or 512."""
    if n <= target:
        return n, n
    tile = target  # multiple of 8
    return tile, pl.cdiv(n, tile) * tile


def _choose_f_chunk(f, target=2048):
    """d_ffn chunk size: full if small, else a 128-multiple divisor <= target."""
    if f <= target:
        return f
    for c in range(target, 127, -128):
        if f % c == 0:
            return c
    return f


def _pad_rows(x2d, n_pad):
    n = x2d.shape[0]
    if n_pad == n:
        return x2d
    return jnp.pad(x2d, ((0, n_pad - n), (0, 0)))


def _layernorm(z, gamma, beta):
    mean = jnp.mean(z, axis=-1, keepdims=True)
    var = jnp.mean((z - mean) ** 2, axis=-1, keepdims=True)
    return (z - mean) * lax.rsqrt(var + _LN_EPS) * gamma + beta


# ----------------------------------------------------------------------------
# Pallas kernels
# ----------------------------------------------------------------------------
def fused_attn_kernel(xq_ref, xkv_ref, mask_ref, wq_ref, bq_ref, wkv_ref, bkv_ref,
                      ctx_ref, score_ref, kv_scratch, *, num_heads):
    """Fused {Q,K,V} projection + multi-head attention for one (batch, q-tile) step.

    xq:(1,TQ,D) query-side activation tile       xkv:(1,Skv,D) kv-side activation
    wq:(D,D) bq:(1,D)  wkv:(D,2D) bkv:(1,2D)     mask:(1,1,TQ,Skv) (0 -> masked)
    ctx:(1,TQ,D) bf16  scores:(1,H,TQ,Skv) f32   kv_scratch:(Skv,2D) bf16
    """
    D = wq_ref.shape[0]
    dh = D // num_heads
    qi = pl.program_id(1)

    # Project K/V once per batch element (first q tile), cache in VMEM scratch.
    @pl.when(qi == 0)
    def _():
        xkv = xkv_ref[0].astype(jnp.bfloat16)
        kv = (jnp.dot(xkv, wkv_ref[...], preferred_element_type=jnp.float32)
              + bkv_ref[...].astype(jnp.float32))
        kv_scratch[...] = kv.astype(jnp.bfloat16)

    xq = xq_ref[0].astype(jnp.bfloat16)
    q = (jnp.dot(xq, wq_ref[...], preferred_element_type=jnp.float32)
         + bq_ref[...].astype(jnp.float32)).astype(jnp.bfloat16)       # (TQ, D)
    k = kv_scratch[:, :D]                                              # (Skv, D) bf16
    v = kv_scratch[:, D:]                                              # (Skv, D) bf16

    # Additive mask bias (0 where kept, -1e9 where masked), shared across heads.
    bias = (mask_ref[0, 0].astype(jnp.float32) - 1.0) * 1e9            # (TQ, Skv)
    scale = 1.0 / (dh ** 0.5)

    ctx_parts = []
    for h in range(num_heads):
        lo = h * dh
        qh = q[:, lo:lo + dh]
        kh = k[:, lo:lo + dh]
        vh = v[:, lo:lo + dh]

        # contract over dh without materializing k.T
        s = lax.dot_general(qh, kh, (((1,), (1,)), ((), ())),
                            preferred_element_type=jnp.float32) * scale + bias
        s_max = jnp.max(s, axis=-1, keepdims=True)
        e = jnp.exp(s - s_max)
        p = e / jnp.sum(e, axis=-1, keepdims=True)     # exact: scores are returned

        score_ref[0, h] = p.astype(score_ref.dtype)
        ctx_parts.append(jnp.dot(p.astype(jnp.bfloat16), vh,
                                 preferred_element_type=jnp.float32))

    # single lane-dense store of the full context tile
    ctx_ref[0] = jnp.concatenate(ctx_parts, axis=-1).astype(ctx_ref.dtype)
    # TODO(synk): flash-style Sk tiling (online softmax) if Skv ever gets large enough
    # that (Skv, 2D) K/V + (TQ, Skv) tiles stop fitting VMEM.


def proj_residual_ln_kernel(ctx_ref, res_ref, w_ref, b_ref, g_ref, beta_ref, o_ref):
    """o = LayerNorm(ctx @ wo + bo + residual)  -- fused output proj + add + LN."""
    y = (jnp.dot(ctx_ref[...].astype(jnp.bfloat16), w_ref[...],
                 preferred_element_type=jnp.float32)
         + b_ref[...].astype(jnp.float32)
         + res_ref[...].astype(jnp.float32))
    o_ref[...] = _layernorm(y, g_ref[...], beta_ref[...]).astype(o_ref.dtype)


def ffn_ln_kernel(x_ref, w1_ref, b1_ref, w2_ref, b2_ref, g_ref, beta_ref, o_ref,
                  acc_ref):
    """o = LayerNorm(relu(x @ w1 + b1) @ w2 + b2), d_ffn chunked over grid axis 1."""
    j = pl.program_id(1)

    @pl.when(j == 0)
    def _():
        acc_ref[...] = jnp.zeros_like(acc_ref)

    h = (jnp.dot(x_ref[...].astype(jnp.bfloat16), w1_ref[...],
                 preferred_element_type=jnp.float32)
         + b1_ref[...].astype(jnp.float32))
    h = jnp.maximum(h, 0.0).astype(jnp.bfloat16)
    acc_ref[...] += jnp.dot(h, w2_ref[...], preferred_element_type=jnp.float32)

    @pl.when(j == pl.num_programs(1) - 1)
    def _():
        y = acc_ref[...] + b2_ref[...].astype(jnp.float32)
        o_ref[...] = _layernorm(y, g_ref[...], beta_ref[...]).astype(o_ref.dtype)


# ----------------------------------------------------------------------------
# pallas_call wrappers
# ----------------------------------------------------------------------------
def attention(xq, xkv, mask, wq, bq, wkv, bkv, num_heads, *, q_target=256):
    """xq:(B,Sq,D) xkv:(B,Skv,D) mask:(B,1,Sq,Skv) -> ctx:(B,Sq,D) bf16,
    scores:(B,H,Sq,Skv) f32.  Q/K/V projections happen inside the kernel."""
    B, Sq, D = xq.shape
    Skv = xkv.shape[1]
    H = num_heads

    TQ, Sq_pad = _choose_row_tile(Sq, q_target)
    if Sq_pad != Sq:
        xq = jnp.pad(xq, ((0, 0), (0, Sq_pad - Sq), (0, 0)))
        mask = jnp.pad(mask, ((0, 0), (0, 0), (0, Sq_pad - Sq), (0, 0)))
    nq = Sq_pad // TQ

    kernel = functools.partial(fused_attn_kernel, num_heads=H)
    ctx, scores = pl.pallas_call(
        kernel,
        out_shape=(
            jax.ShapeDtypeStruct((B, Sq_pad, D), jnp.bfloat16),
            jax.ShapeDtypeStruct((B, H, Sq_pad, Skv), jnp.float32),
        ),
        grid=(B, nq),
        in_specs=[
            pl.BlockSpec((1, TQ, D), lambda b, i: (b, i, 0)),          # q-side tile
            pl.BlockSpec((1, Skv, D), lambda b, i: (b, 0, 0)),         # kv-side, per batch
            pl.BlockSpec((1, 1, TQ, Skv), lambda b, i: (b, 0, i, 0)),  # mask tile
            pl.BlockSpec((D, D), lambda b, i: (0, 0)),                 # wq (resident)
            pl.BlockSpec((1, D), lambda b, i: (0, 0)),
            pl.BlockSpec((D, 2 * D), lambda b, i: (0, 0)),             # wkv (resident)
            pl.BlockSpec((1, 2 * D), lambda b, i: (0, 0)),
        ],
        out_specs=(
            pl.BlockSpec((1, TQ, D), lambda b, i: (b, i, 0)),
            pl.BlockSpec((1, H, TQ, Skv), lambda b, i: (b, 0, i, 0)),
        ),
        scratch_shapes=[pltpu.VMEM((Skv, 2 * D), jnp.bfloat16)],
        compiler_params=pltpu.CompilerParams(
            dimension_semantics=("parallel", "arbitrary"),
            vmem_limit_bytes=_VMEM_LIMIT),
        # TODO(synk): pipeline_mode=pl.Buffered(1) on the resident weight specs once
        # single-buffering of constant-index blocks is uniformly supported.
    )(xq, xkv, mask, wq, bq, wkv, bkv)

    if Sq_pad != Sq:
        ctx = ctx[:, :Sq]
        scores = scores[:, :, :Sq]
    return ctx, scores


def proj_residual_ln(ctx2d, res2d, wo, bo, gamma, beta):
    n, d = ctx2d.shape
    tile, n_pad = _choose_row_tile(n)
    ctx2d = _pad_rows(ctx2d, n_pad)
    res2d = _pad_rows(res2d, n_pad)
    out = pl.pallas_call(
        proj_residual_ln_kernel,
        out_shape=jax.ShapeDtypeStruct((n_pad, d), jnp.float32),
        grid=(n_pad // tile,),
        in_specs=[
            pl.BlockSpec((tile, d), lambda i: (i, 0)),
            pl.BlockSpec((tile, d), lambda i: (i, 0)),
            pl.BlockSpec((d, d), lambda i: (0, 0)),
            pl.BlockSpec((1, d), lambda i: (0, 0)),
            pl.BlockSpec((1, d), lambda i: (0, 0)),
            pl.BlockSpec((1, d), lambda i: (0, 0)),
        ],
        out_specs=pl.BlockSpec((tile, d), lambda i: (i, 0)),
        compiler_params=pltpu.CompilerParams(
            dimension_semantics=("parallel",),
            vmem_limit_bytes=_VMEM_LIMIT),
    )(ctx2d, res2d, wo, bo, gamma, beta)
    return out[:n] if n_pad != n else out


def ffn_ln(x2d, w1, b1, w2, b2, gamma, beta):
    n, d = x2d.shape
    f = w1.shape[1]
    tile, n_pad = _choose_row_tile(n)
    x2d = _pad_rows(x2d, n_pad)
    fchunk = _choose_f_chunk(f)
    nf = f // fchunk
    out = pl.pallas_call(
        ffn_ln_kernel,
        out_shape=jax.ShapeDtypeStruct((n_pad, d), jnp.float32),
        grid=(n_pad // tile, nf),
        in_specs=[
            pl.BlockSpec((tile, d), lambda i, j: (i, 0)),
            pl.BlockSpec((d, fchunk), lambda i, j: (0, j)),
            pl.BlockSpec((1, fchunk), lambda i, j: (0, j)),
            pl.BlockSpec((fchunk, d), lambda i, j: (j, 0)),
            pl.BlockSpec((1, d), lambda i, j: (0, 0)),
            pl.BlockSpec((1, d), lambda i, j: (0, 0)),
            pl.BlockSpec((1, d), lambda i, j: (0, 0)),
        ],
        out_specs=pl.BlockSpec((tile, d), lambda i, j: (i, 0)),
        scratch_shapes=[pltpu.VMEM((tile, d), jnp.float32)],
        compiler_params=pltpu.CompilerParams(
            dimension_semantics=("parallel", "arbitrary"),
            vmem_limit_bytes=_VMEM_LIMIT),
    )(x2d, w1, b1, w2, b2, gamma, beta)
    return out[:n] if n_pad != n else out


# ----------------------------------------------------------------------------
# decoder block
# ----------------------------------------------------------------------------
@functools.partial(jax.jit, static_argnames=("num_heads",))
def decoder_block(x, enc_out, self_mask, cross_mask, params, num_heads):
    B, St, D = x.shape

    # --- self attention (Q/K/V projected in-kernel) + out-proj + residual + norm1
    sa = params["self_attn"]
    ctx, self_scores = attention(
        x, x, self_mask, sa["wq"], sa["bq"], sa["wkv"], sa["bkv"], num_heads)
    x2d = proj_residual_ln(
        ctx.reshape(B * St, D), x.reshape(B * St, D).astype(jnp.float32),
        sa["wo"], sa["bo"], params["ln1_g"], params["ln1_b"])

    # --- cross attention + out-proj + residual + norm2
    ca = params["cross_attn"]
    cctx, cross_scores = attention(
        x2d.reshape(B, St, D), enc_out, cross_mask,
        ca["wq"], ca["bq"], ca["wkv"], ca["bkv"], num_heads)
    x2d = proj_residual_ln(
        cctx.reshape(B * St, D), x2d,
        ca["wo"], ca["bo"], params["ln2_g"], params["ln2_b"])

    # --- FFN + norm3 fused (no residual in the reference; dropout == identity)
    out2d = ffn_ln(
        x2d, params["w1"], params["b1"], params["w2"], params["b2"],
        params["ln3_g"], params["ln3_b"])
    return out2d.reshape(B, St, D), self_scores, cross_scores


# ----------------------------------------------------------------------------
# Deterministic parameter init (bf16 weights/biases, f32 LayerNorm params)
# ----------------------------------------------------------------------------
def _init_proj(key, d_in, d_out):
    w = jax.random.normal(key, (d_in, d_out), jnp.float32) / jnp.sqrt(d_in)
    return w.astype(jnp.bfloat16)


def init_attn(key, d_model):
    ks = jax.random.split(key, 4)
    wq, wk, wv, wo = (_init_proj(k, d_model, d_model) for k in ks)
    return dict(
        wq=wq, bq=jnp.zeros((1, d_model), jnp.bfloat16),
        wkv=jnp.concatenate([wk, wv], axis=1),
        bkv=jnp.zeros((1, 2 * d_model), jnp.bfloat16),
        wo=wo, bo=jnp.zeros((1, d_model), jnp.bfloat16),
    )


def init_params(key, d_model, d_ffn):
    ks = jax.random.split(key, 4)
    ones = jnp.ones((1, d_model), jnp.float32)
    zeros = jnp.zeros((1, d_model), jnp.float32)
    return dict(
        self_attn=init_attn(ks[0], d_model),
        cross_attn=init_attn(ks[1], d_model),
        w1=_init_proj(ks[2], d_model, d_ffn),
        b1=jnp.zeros((1, d_ffn), jnp.bfloat16),
        w2=_init_proj(ks[3], d_ffn, d_model),
        b2=jnp.zeros((1, d_model), jnp.bfloat16),
        ln1_g=ones, ln1_b=zeros,
        ln2_g=ones, ln2_b=zeros,
        ln3_g=ones, ln3_b=zeros,
    )


# ----------------------------------------------------------------------------
if __name__ == "__main__":
    B, tgt_len, src_len = 2, 8, 8
    d_model, d_ffn, num_heads = 32, 64, 4
    # p_dropout = 0.1 in the module; dropout is identity at inference time.

    key = jax.random.PRNGKey(0)
    kx, ke, kp = jax.random.split(key, 3)
    x = jax.random.normal(kx, (B, tgt_len, d_model), jnp.float32)
    enc_out = jax.random.normal(ke, (B, src_len, d_model), jnp.float32)

    # self-attention mask: causal (B,1,tgt,tgt); cross mask: all ones (B,1,tgt,src)
    self_mask = jnp.broadcast_to(
        jnp.tril(jnp.ones((tgt_len, tgt_len), jnp.float32))[None, None],
        (B, 1, tgt_len, tgt_len),
    )
    cross_mask = jnp.ones((B, 1, tgt_len, src_len), jnp.float32)

    params = init_params(kp, d_model, d_ffn)

    out, self_scores, cross_scores = decoder_block(
        x, enc_out, self_mask, cross_mask, params, num_heads=num_heads
    )
    jax.block_until_ready((out, self_scores, cross_scores))

    assert out.shape == (B, tgt_len, d_model)
    assert self_scores.shape == (B, num_heads, tgt_len, tgt_len)
    assert cross_scores.shape == (B, num_heads, tgt_len, src_len)
    assert bool(jnp.all(jnp.isfinite(out)))
    assert bool(jnp.all(jnp.isfinite(self_scores)))
    assert bool(jnp.all(jnp.isfinite(cross_scores)))
    print("KERNEL_OK")
</pallas_src>

<mosaic_0001>
module attributes {stable_mosaic.version = 11 : i64} {
  func.func @proj_residual_ln_kernel(%arg0: i32, %arg1: memref<16x32xbf16, #tpu.memory_space<vmem>>, %arg2: memref<16x32xf32, #tpu.memory_space<vmem>>, %arg3: memref<32x32xbf16, #tpu.memory_space<vmem>>, %arg4: memref<1x32xbf16, #tpu.memory_space<vmem>>, %arg5: memref<1x32xf32, #tpu.memory_space<vmem>>, %arg6: memref<1x32xf32, #tpu.memory_space<vmem>>, %arg7: memref<16x32xf32, #tpu.memory_space<vmem>>) attributes {dimension_semantics = [#tpu.dimension_semantics<parallel>], iteration_bounds = array<i64: 1>, scalar_prefetch = 0 : i64, scratch_operands = 0 : i64, tpu.core_type = #tpu.core_type<tc>, window_params = [{transform_indices = @transform_0, window_bounds = array<i64: 16, 32>}, {transform_indices = @transform_1, window_bounds = array<i64: 16, 32>}, {pipeline_mode = #tpu.pipeline_mode<synchronous>, transform_indices = @transform_2, window_bounds = array<i64: 32, 32>}, {pipeline_mode = #tpu.pipeline_mode<synchronous>, transform_indices = @transform_3, window_bounds = array<i64: 1, 32>}, {pipeline_mode = #tpu.pipeline_mode<synchronous>, transform_indices = @transform_4, window_bounds = array<i64: 1, 32>}, {pipeline_mode = #tpu.pipeline_mode<synchronous>, transform_indices = @transform_5, window_bounds = array<i64: 1, 32>}, {transform_indices = @transform_6, window_bounds = array<i64: 16, 32>}]} {
    %c0 = arith.constant 0 : index
    %c0_0 = arith.constant 0 : index
    %0 = vector.load %arg1[%c0, %c0_0] : memref<16x32xbf16, #tpu.memory_space<vmem>>, vector<16x32xbf16>
    %c0_1 = arith.constant 0 : index
    %c0_2 = arith.constant 0 : index
    %1 = vector.load %arg3[%c0_1, %c0_2] : memref<32x32xbf16, #tpu.memory_space<vmem>>, vector<32x32xbf16>
    %cst = arith.constant dense<0.000000e+00> : vector<16x32xf32>
    %2 = tpu.matmul %0, %1, %cst {dimension_numbers = #tpu.dot_dimension_numbers<[1], [0], [0], [1], [0, 0, 1, 1], [], []>} : vector<16x32xbf16>, vector<32x32xbf16>, vector<16x32xf32> -> vector<16x32xf32>
    %c0_3 = arith.constant 0 : index
    %c0_4 = arith.constant 0 : index
    %3 = vector.load %arg4[%c0_3, %c0_4] : memref<1x32xbf16, #tpu.memory_space<vmem>>, vector<1x32xbf16>
    %4 = arith.extf %3 : vector<1x32xbf16> to vector<1x32xf32>
    %5 = vector.broadcast %4 : vector<1x32xf32> to vector<16x32xf32>
    %6 = arith.addf %2, %5 : vector<16x32xf32>
    %c0_5 = arith.constant 0 : index
    %c0_6 = arith.constant 0 : index
    %7 = vector.load %arg2[%c0_5, %c0_6] : memref<16x32xf32, #tpu.memory_space<vmem>>, vector<16x32xf32>
    %8 = arith.addf %6, %7 : vector<16x32xf32>
    %c0_7 = arith.constant 0 : index
    %c0_8 = arith.constant 0 : index
    %9 = vector.load %arg5[%c0_7, %c0_8] : memref<1x32xf32, #tpu.memory_space<vmem>>, vector<1x32xf32>
    %c0_9 = arith.constant 0 : index
    %c0_10 = arith.constant 0 : index
    %10 = vector.load %arg6[%c0_9, %c0_10] : memref<1x32xf32, #tpu.memory_space<vmem>>, vector<1x32xf32>
    %cst_11 = arith.constant dense<0.000000e+00> : vector<16xf32>
    %11 = vector.multi_reduction <add>, %8, %cst_11 [1] : vector<16x32xf32> to vector<16xf32>
    %12 = vector.shape_cast %11 : vector<16xf32> to vector<16x1xf32>
    %cst_12 = arith.constant 3.200000e+01 : f32
    %13 = vector.broadcast %cst_12 : f32 to vector<16x1xf32>
    %14 = arith.divf %12, %13 : vector<16x1xf32>
    %15 = vector.broadcast %14 : vector<16x1xf32> to vector<16x32xf32>
    %16 = arith.subf %8, %15 : vector<16x32xf32>
    %17 = arith.mulf %16, %16 : vector<16x32xf32>
    %cst_13 = arith.constant dense<0.000000e+00> : vector<16xf32>
    %18 = vector.multi_reduction <add>, %17, %cst_13 [1] : vector<16x32xf32> to vector<16xf32>
    %19 = vector.shape_cast %18 : vector<16xf32> to vector<16x1xf32>
    %cst_14 = arith.constant 3.200000e+01 : f32
    %20 = vector.broadcast %cst_14 : f32 to vector<16x1xf32>
    %21 = arith.divf %19, %20 : vector<16x1xf32>
    %22 = vector.broadcast %14 : vector<16x1xf32> to vector<16x32xf32>
    %23 = arith.subf %8, %22 : vector<16x32xf32>
    %cst_15 = arith.constant 9.99999974E-6 : f32
    %24 = vector.broadcast %cst_15 : f32 to vector<16x1xf32>
    %25 = arith.addf %21, %24 : vector<16x1xf32>
    %26 = math.rsqrt %25 : vector<16x1xf32>
    %27 = vector.broadcast %26 : vector<16x1xf32> to vector<16x32xf32>
    %28 = arith.mulf %23, %27 : vector<16x32xf32>
    %29 = vector.broadcast %9 : vector<1x32xf32> to vector<16x32xf32>
    %30 = arith.mulf %28, %29 : vector<16x32xf32>
    %31 = vector.broadcast %10 : vector<1x32xf32> to vector<16x32xf32>
    %32 = arith.addf %30, %31 : vector<16x32xf32>
    %c0_16 = arith.constant 0 : index
    %c0_17 = arith.constant 0 : index
    %33 = vector.load %arg7[%c0_16, %c0_17] : memref<16x32xf32, #tpu.memory_space<vmem>>, vector<16x32xf32>
    tpu.vector_store %arg7[%c0_16, %c0_17], %32 {strides = array<i32>} : memref<16x32xf32, #tpu.memory_space<vmem>>, vector<16x32xf32>,
    return
  }
  func.func @transform_0(%arg0: i32) -> (i32, i32) {
    %c0_i32 = arith.constant 0 : i32
    %c0_i32_0 = arith.constant 0 : i32
    return %arg0, %c0_i32 : i32, i32
  }
  func.func @transform_1(%arg0: i32) -> (i32, i32) {
    %c0_i32 = arith.constant 0 : i32
    %c0_i32_0 = arith.constant 0 : i32
    return %arg0, %c0_i32 : i32, i32
  }
  func.func @transform_2(%arg0: i32) -> (i32, i32) {
    %c0_i32 = arith.constant 0 : i32
    %c0_i32_0 = arith.constant 0 : i32
    %c0_i32_1 = arith.constant 0 : i32
    return %c0_i32, %c0_i32_0 : i32, i32
  }
  func.func @transform_3(%arg0: i32) -> (i32, i32) {
    %c0_i32 = arith.constant 0 : i32
    %c0_i32_0 = arith.constant 0 : i32
    %c0_i32_1 = arith.constant 0 : i32
    return %c0_i32, %c0_i32_0 : i32, i32
  }
  func.func @transform_4(%arg0: i32) -> (i32, i32) {
    %c0_i32 = arith.constant 0 : i32
    %c0_i32_0 = arith.constant 0 : i32
    %c0_i32_1 = arith.constant 0 : i32
    return %c0_i32, %c0_i32_0 : i32, i32
  }
  func.func @transform_5(%arg0: i32) -> (i32, i32) {
    %c0_i32 = arith.constant 0 : i32
    %c0_i32_0 = arith.constant 0 : i32
    %c0_i32_1 = arith.constant 0 : i32
    return %c0_i32, %c0_i32_0 : i32, i32
  }
  func.func @transform_6(%arg0: i32) -> (i32, i32) {
    %c0_i32 = arith.constant 0 : i32
    %c0_i32_0 = arith.constant 0 : i32
    return %arg0, %c0_i32 : i32, i32
  }
}

module attributes {stable_mosaic.version = 11 : i64} {
  func.func @ffn_ln_kernel(%arg0: i32, %arg1: i32, %arg2: memref<16x32xf32, #tpu.memory_space<vmem>>, %arg3: memref<32x64xbf16, #tpu.memory_space<vmem>>, %arg4: memref<1x64xbf16, #tpu.memory_space<vmem>>, %arg5: memref<64x32xbf16, #tpu.memory_space<vmem>>, %arg6: memref<1x32xbf16, #tpu.memory_space<vmem>>, %arg7: memref<1x32xf32, #tpu.memory_space<vmem>>, %arg8: memref<1x32xf32, #tpu.memory_space<vmem>>, %arg9: memref<16x32xf32, #tpu.memory_space<vmem>>, %arg10: memref<16x32xf32, #tpu.memory_space<vmem>>) attributes {dimension_semantics = [#tpu.dimension_semantics<parallel>, #tpu.dimension_semantics<arbitrary>], iteration_bounds = array<i64: 1, 1>, scalar_prefetch = 0 : i64, scratch_operands = 1 : i64, tpu.core_type = #tpu.core_type<tc>, window_params = [{transform_indices = @transform_0, window_bounds = array<i64: 16, 32>}, {transform_indices = @transform_1, window_bounds = array<i64: 32, 64>}, {transform_indices = @transform_2, window_bounds = array<i64: 1, 64>}, {transform_indices = @transform_3, window_bounds = array<i64: 64, 32>}, {pipeline_mode = #tpu.pipeline_mode<synchronous>, transform_indices = @transform_4, window_bounds = array<i64: 1, 32>}, {pipeline_mode = #tpu.pipeline_mode<synchronous>, transform_indices = @transform_5, window_bounds = array<i64: 1, 32>}, {pipeline_mode = #tpu.pipeline_mode<synchronous>, transform_indices = @transform_6, window_bounds = array<i64: 1, 32>}, {transform_indices = @transform_7, window_bounds = array<i64: 16, 32>}]} {
    %c0_i32 = arith.constant 0 : i32
    %0 = arith.cmpi eq, %arg1, %c0_i32 : i32
    %1 = arith.extui %0 : i1 to i32
    %c0_i32_0 = arith.constant 0 : i32
    %2 = arith.cmpi ne, %1, %c0_i32_0 : i32
    scf.if %2 {
      %cst_16 = arith.constant 0.000000e+00 : f32
      %22 = vector.broadcast %cst_16 : f32 to vector<16x32xf32>
      %c0_17 = arith.constant 0 : index
      %c0_18 = arith.constant 0 : index
      %23 = vector.load %arg10[%c0_17, %c0_18] : memref<16x32xf32, #tpu.memory_space<vmem>>, vector<16x32xf32>
      tpu.vector_store %arg10[%c0_17, %c0_18], %22 {strides = array<i32>} : memref<16x32xf32, #tpu.memory_space<vmem>>, vector<16x32xf32>,
    } else {
    }
    %c0 = arith.constant 0 : index
    %c0_1 = arith.constant 0 : index
    %3 = vector.load %arg2[%c0, %c0_1] : memref<16x32xf32, #tpu.memory_space<vmem>>, vector<16x32xf32>
    %4 = arith.truncf %3 : vector<16x32xf32> to vector<16x32xbf16>
    %c0_2 = arith.constant 0 : index
    %c0_3 = arith.constant 0 : index
    %5 = vector.load %arg3[%c0_2, %c0_3] : memref<32x64xbf16, #tpu.memory_space<vmem>>, vector<32x64xbf16>
    %cst = arith.constant dense<0.000000e+00> : vector<16x64xf32>
    %6 = tpu.matmul %4, %5, %cst {dimension_numbers = #tpu.dot_dimension_numbers<[1], [0], [0], [1], [0, 0, 1, 1], [], []>} : vector<16x32xbf16>, vector<32x64xbf16>, vector<16x64xf32> -> vector<16x64xf32>
    %c0_4 = arith.constant 0 : index
    %c0_5 = arith.constant 0 : index
    %7 = vector.load %arg4[%c0_4, %c0_5] : memref<1x64xbf16, #tpu.memory_space<vmem>>, vector<1x64xbf16>
    %8 = arith.extf %7 : vector<1x64xbf16> to vector<1x64xf32>
    %9 = vector.broadcast %8 : vector<1x64xf32> to vector<16x64xf32>
    %10 = arith.addf %6, %9 : vector<16x64xf32>
    %cst_6 = arith.constant 0.000000e+00 : f32
    %11 = vector.broadcast %cst_6 : f32 to vector<16x64xf32>
    %12 = arith.maximumf %10, %11 : vector<16x64xf32>
    %13 = arith.truncf %12 : vector<16x64xf32> to vector<16x64xbf16>
    %c0_7 = arith.constant 0 : index
    %c0_8 = arith.constant 0 : index
    %14 = vector.load %arg10[%c0_7, %c0_8] : memref<16x32xf32, #tpu.memory_space<vmem>>, vector<16x32xf32>
    %c0_9 = arith.constant 0 : index
    %c0_10 = arith.constant 0 : index
    %15 = vector.load %arg5[%c0_9, %c0_10] : memref<64x32xbf16, #tpu.memory_space<vmem>>, vector<64x32xbf16>
    %cst_11 = arith.constant dense<0.000000e+00> : vector<16x32xf32>
    %16 = tpu.matmul %13, %15, %cst_11 {dimension_numbers = #tpu.dot_dimension_numbers<[1], [0], [0], [1], [0, 0, 1, 1], [], []>} : vector<16x64xbf16>, vector<64x32xbf16>, vector<16x32xf32> -> vector<16x32xf32>
    %17 = arith.addf %14, %16 : vector<16x32xf32>
    %c0_12 = arith.constant 0 : index
    %c0_13 = arith.constant 0 : index
    %18 = vector.load %arg10[%c0_12, %c0_13] : memref<16x32xf32, #tpu.memory_space<vmem>>, vector<16x32xf32>
    tpu.vector_store %arg10[%c0_12, %c0_13], %17 {strides = array<i32>} : memref<16x32xf32, #tpu.memory_space<vmem>>, vector<16x32xf32>,
    %c0_i32_14 = arith.constant 0 : i32
    %19 = arith.cmpi eq, %arg1, %c0_i32_14 : i32
    %20 = arith.extui %19 : i1 to i32
    %c0_i32_15 = arith.constant 0 : i32
    %21 = arith.cmpi ne, %20, %c0_i32_15 : i32
    scf.if %21 {
      %c0_16 = arith.constant 0 : index
      %c0_17 = arith.constant 0 : index
      %22 = vector.load %arg10[%c0_16, %c0_17] : memref<16x32xf32, #tpu.memory_space<vmem>>, vector<16x32xf32>
      %c0_18 = arith.constant 0 : index
      %c0_19 = arith.constant 0 : index
      %23 = vector.load %arg6[%c0_18, %c0_19] : memref<1x32xbf16, #tpu.memory_space<vmem>>, vector<1x32xbf16>
      %24 = arith.extf %23 : vector<1x32xbf16> to vector<1x32xf32>
      %25 = vector.broadcast %24 : vector<1x32xf32> to vector<16x32xf32>
      %26 = arith.addf %22, %25 : vector<16x32xf32>
      %c0_20 = arith.constant 0 : index
      %c0_21 = arith.constant 0 : index
      %27 = vector.load %arg7[%c0_20, %c0_21] : memref<1x32xf32, #tpu.memory_space<vmem>>, vector<1x32xf32>
      %c0_22 = arith.constant 0 : index
      %c0_23 = arith.constant 0 : index
      %28 = vector.load %arg8[%c0_22, %c0_23] : memref<1x32xf32, #tpu.memory_space<vmem>>, vector<1x32xf32>
      %cst_24 = arith.constant dense<0.000000e+00> : vector<16xf32>
      %29 = vector.multi_reduction <add>, %26, %cst_24 [1] : vector<16x32xf32> to vector<16xf32>
      %30 = vector.shape_cast %29 : vector<16xf32> to vector<16x1xf32>
      %cst_25 = arith.constant 3.200000e+01 : f32
      %31 = vector.broadcast %cst_25 : f32 to vector<16x1xf32>
      %32 = arith.divf %30, %31 : vector<16x1xf32>
      %33 = vector.broadcast %32 : vector<16x1xf32> to vector<16x32xf32>
      %34 = arith.subf %26, %33 : vector<16x32xf32>
      %35 = arith.mulf %34, %34 : vector<16x32xf32>
      %cst_26 = arith.constant dense<0.000000e+00> : vector<16xf32>
      %36 = vector.multi_reduction <add>, %35, %cst_26 [1] : vector<16x32xf32> to vector<16xf32>
      %37 = vector.shape_cast %36 : vector<16xf32> to vector<16x1xf32>
      %cst_27 = arith.constant 3.200000e+01 : f32
      %38 = vector.broadcast %cst_27 : f32 to vector<16x1xf32>
      %39 = arith.divf %37, %38 : vector<16x1xf32>
      %40 = vector.broadcast %32 : vector<16x1xf32> to vector<16x32xf32>
      %41 = arith.subf %26, %40 : vector<16x32xf32>
      %cst_28 = arith.constant 9.99999974E-6 : f32
      %42 = vector.broadcast %cst_28 : f32 to vector<16x1xf32>
      %43 = arith.addf %39, %42 : vector<16x1xf32>
      %44 = math.rsqrt %43 : vector<16x1xf32>
      %45 = vector.broadcast %44 : vector<16x1xf32> to vector<16x32xf32>
      %46 = arith.mulf %41, %45 : vector<16x32xf32>
      %47 = vector.broadcast %27 : vector<1x32xf32> to vector<16x32xf32>
      %48 = arith.mulf %46, %47 : vector<16x32xf32>
      %49 = vector.broadcast %28 : vector<1x32xf32> to vector<16x32xf32>
      %50 = arith.addf %48, %49 : vector<16x32xf32>
      %c0_29 = arith.constant 0 : index
      %c0_30 = arith.constant 0 : index
      %51 = vector.load %arg9[%c0_29, %c0_30] : memref<16x32xf32, #tpu.memory_space<vmem>>, vector<16x32xf32>
      tpu.vector_store %arg9[%c0_29, %c0_30], %50 {strides = array<i32>} : memref<16x32xf32, #tpu.memory_space<vmem>>, vector<16x32xf32>,
    } else {
    }
    return
  }
  func.func @transform_0(%arg0: i32, %arg1: i32) -> (i32, i32) {
    %c0_i32 = arith.constant 0 : i32
    %c0_i32_0 = arith.constant 0 : i32
    return %arg0, %c0_i32 : i32, i32
  }
  func.func @transform_1(%arg0: i32, %arg1: i32) -> (i32, i32) {
    %c0_i32 = arith.constant 0 : i32
    %c0_i32_0 = arith.constant 0 : i32
    return %c0_i32, %arg1 : i32, i32
  }
  func.func @transform_2(%arg0: i32, %arg1: i32) -> (i32, i32) {
    %c0_i32 = arith.constant 0 : i32
    %c0_i32_0 = arith.constant 0 : i32
    return %c0_i32, %arg1 : i32, i32
  }
  func.func @transform_3(%arg0: i32, %arg1: i32) -> (i32, i32) {
    %c0_i32 = arith.constant 0 : i32
    %c0_i32_0 = arith.constant 0 : i32
    return %arg1, %c0_i32 : i32, i32
  }
  func.func @transform_4(%arg0: i32, %arg1: i32) -> (i32, i32) {
    %c0_i32 = arith.constant 0 : i32
    %c0_i32_0 = arith.constant 0 : i32
    %c0_i32_1 = arith.constant 0 : i32
    return %c0_i32, %c0_i32_0 : i32, i32
  }
  func.func @transform_5(%arg0: i32, %arg1: i32) -> (i32, i32) {
    %c0_i32 = arith.constant 0 : i32
    %c0_i32_0 = arith.constant 0 : i32
    %c0_i32_1 = arith.constant 0 : i32
    return %c0_i32, %c0_i32_0 : i32, i32
  }
  func.func @transform_6(%arg0: i32, %arg1: i32) -> (i32, i32) {
    %c0_i32 = arith.constant 0 : i32
    %c0_i32_0 = arith.constant 0 : i32
    %c0_i32_1 = arith.constant 0 : i32
    return %c0_i32, %c0_i32_0 : i32, i32
  }
  func.func @transform_7(%arg0: i32, %arg1: i32) -> (i32, i32) {
    %c0_i32 = arith.constant 0 : i32
    %c0_i32_0 = arith.constant 0 : i32
    return %arg0, %c0_i32 : i32, i32
  }
}

module attributes {stable_mosaic.version = 11 : i64} {
  func.func @fused_attn_kernel(%arg0: i32, %arg1: i32, %arg2: memref<1x8x32xf32, #tpu.memory_space<vmem>>, %arg3: memref<1x8x32xf32, #tpu.memory_space<vmem>>, %arg4: memref<1x1x8x8xf32, #tpu.memory_space<vmem>>, %arg5: memref<32x32xbf16, #tpu.memory_space<vmem>>, %arg6: memref<1x32xbf16, #tpu.memory_space<vmem>>, %arg7: memref<32x64xbf16, #tpu.memory_space<vmem>>, %arg8: memref<1x64xbf16, #tpu.memory_space<vmem>>, %arg9: memref<1x8x32xbf16, #tpu.memory_space<vmem>>, %arg10: memref<1x4x8x8xf32, #tpu.memory_space<vmem>>, %arg11: memref<8x64xbf16, #tpu.memory_space<vmem>>) attributes {dimension_semantics = [#tpu.dimension_semantics<parallel>, #tpu.dimension_semantics<arbitrary>], iteration_bounds = array<i64: 2, 1>, scalar_prefetch = 0 : i64, scratch_operands = 1 : i64, tpu.core_type = #tpu.core_type<tc>, window_params = [{transform_indices = @transform_0, window_bounds = array<i64: 1, 8, 32>}, {transform_indices = @transform_1, window_bounds = array<i64: 1, 8, 32>}, {transform_indices = @transform_2, window_bounds = array<i64: 1, 1, 8, 8>}, {pipeline_mode = #tpu.pipeline_mode<synchronous>, transform_indices = @transform_3, window_bounds = array<i64: 32, 32>}, {pipeline_mode = #tpu.pipeline_mode<synchronous>, transform_indices = @transform_4, window_bounds = array<i64: 1, 32>}, {pipeline_mode = #tpu.pipeline_mode<synchronous>, transform_indices = @transform_5, window_bounds = array<i64: 32, 64>}, {pipeline_mode = #tpu.pipeline_mode<synchronous>, transform_indices = @transform_6, window_bounds = array<i64: 1, 64>}, {transform_indices = @transform_7, window_bounds = array<i64: 1, 8, 32>}, {transform_indices = @transform_8, window_bounds = array<i64: 1, 4, 8, 8>}]} {
    %c0_i32 = arith.constant 0 : i32
    %0 = arith.cmpi eq, %arg1, %c0_i32 : i32
    %1 = arith.extui %0 : i1 to i32
    %c0_i32_0 = arith.constant 0 : i32
    %2 = arith.cmpi ne, %1, %c0_i32_0 : i32
    scf.if %2 {
      %c0_52 = arith.constant 0 : index
      %c0_53 = arith.constant 0 : index
      %c0_54 = arith.constant 0 : index
      %110 = vector.load %arg3[%c0_52, %c0_53, %c0_54] : memref<1x8x32xf32, #tpu.memory_space<vmem>>, vector<1x8x32xf32>
      %111 = vector.shape_cast %110 : vector<1x8x32xf32> to vector<8x32xf32>
      %112 = arith.truncf %111 : vector<8x32xf32> to vector<8x32xbf16>
      %c0_55 = arith.constant 0 : index
      %c0_56 = arith.constant 0 : index
      %113 = vector.load %arg7[%c0_55, %c0_56] : memref<32x64xbf16, #tpu.memory_space<vmem>>, vector<32x64xbf16>
      %cst_57 = arith.constant dense<0.000000e+00> : vector<8x64xf32>
      %114 = tpu.matmul %112, %113, %cst_57 {dimension_numbers = #tpu.dot_dimension_numbers<[1], [0], [0], [1], [0, 0, 1, 1], [], []>} : vector<8x32xbf16>, vector<32x64xbf16>, vector<8x64xf32> -> vector<8x64xf32>
      %c0_58 = arith.constant 0 : index
      %c0_59 = arith.constant 0 : index
      %115 = vector.load %arg8[%c0_58, %c0_59] : memref<1x64xbf16, #tpu.memory_space<vmem>>, vector<1x64xbf16>
      %116 = arith.extf %115 : vector<1x64xbf16> to vector<1x64xf32>
      %117 = vector.broadcast %116 : vector<1x64xf32> to vector<8x64xf32>
      %118 = arith.addf %114, %117 : vector<8x64xf32>
      %119 = arith.truncf %118 : vector<8x64xf32> to vector<8x64xbf16>
      %c0_60 = arith.constant 0 : index
      %c0_61 = arith.constant 0 : index
      %120 = vector.load %arg11[%c0_60, %c0_61] : memref<8x64xbf16, #tpu.memory_space<vmem>>, vector<8x64xbf16>
      tpu.vector_store %arg11[%c0_60, %c0_61], %119 {strides = array<i32>} : memref<8x64xbf16, #tpu.memory_space<vmem>>, vector<8x64xbf16>,
    } else {
    }
    %c0 = arith.constant 0 : index
    %c0_1 = arith.constant 0 : index
    %c0_2 = arith.constant 0 : index
    %3 = vector.load %arg2[%c0, %c0_1, %c0_2] : memref<1x8x32xf32, #tpu.memory_space<vmem>>, vector<1x8x32xf32>
    %4 = vector.shape_cast %3 : vector<1x8x32xf32> to vector<8x32xf32>
    %5 = arith.truncf %4 : vector<8x32xf32> to vector<8x32xbf16>
    %c0_3 = arith.constant 0 : index
    %c0_4 = arith.constant 0 : index
    %6 = vector.load %arg5[%c0_3, %c0_4] : memref<32x32xbf16, #tpu.memory_space<vmem>>, vector<32x32xbf16>
    %cst = arith.constant dense<0.000000e+00> : vector<8x32xf32>
    %7 = tpu.matmul %5, %6, %cst {dimension_numbers = #tpu.dot_dimension_numbers<[1], [0], [0], [1], [0, 0, 1, 1], [], []>} : vector<8x32xbf16>, vector<32x32xbf16>, vector<8x32xf32> -> vector<8x32xf32>
    %c0_5 = arith.constant 0 : index
    %c0_6 = arith.constant 0 : index
    %8 = vector.load %arg6[%c0_5, %c0_6] : memref<1x32xbf16, #tpu.memory_space<vmem>>, vector<1x32xbf16>
    %9 = arith.extf %8 : vector<1x32xbf16> to vector<1x32xf32>
    %10 = vector.broadcast %9 : vector<1x32xf32> to vector<8x32xf32>
    %11 = arith.addf %7, %10 : vector<8x32xf32>
    %12 = arith.truncf %11 : vector<8x32xf32> to vector<8x32xbf16>
    %c0_7 = arith.constant 0 : index
    %c0_8 = arith.constant 0 : index
    %13 = vector.load %arg11[%c0_7, %c0_8] : memref<8x64xbf16, #tpu.memory_space<vmem>>, vector<8x32xbf16>
    %c0_9 = arith.constant 0 : index
    %c32 = arith.constant 32 : index
    %14 = vector.load %arg11[%c0_9, %c32] : memref<8x64xbf16, #tpu.memory_space<vmem>>, vector<8x32xbf16>
    %c0_10 = arith.constant 0 : index
    %c0_11 = arith.constant 0 : index
    %c0_12 = arith.constant 0 : index
    %c0_13 = arith.constant 0 : index
    %15 = vector.load %arg4[%c0_10, %c0_11, %c0_12, %c0_13] : memref<1x1x8x8xf32, #tpu.memory_space<vmem>>, vector<1x1x8x8xf32>
    %16 = vector.shape_cast %15 : vector<1x1x8x8xf32> to vector<8x8xf32>
    %cst_14 = arith.constant 1.000000e+00 : f32
    %17 = vector.broadcast %cst_14 : f32 to vector<8x8xf32>
    %18 = arith.subf %16, %17 : vector<8x8xf32>
    %cst_15 = arith.constant 1.000000e+09 : f32
    %19 = vector.broadcast %cst_15 : f32 to vector<8x8xf32>
    %20 = arith.mulf %18, %19 : vector<8x8xf32>
    %21 = vector.extract_strided_slice %12 {offsets = [0, 0], sizes = [8, 8], strides = [1, 1]} : vector<8x32xbf16> to vector<8x8xbf16>
    %22 = vector.extract_strided_slice %13 {offsets = [0, 0], sizes = [8, 8], strides = [1, 1]} : vector<8x32xbf16> to vector<8x8xbf16>
    %23 = vector.extract_strided_slice %14 {offsets = [0, 0], sizes = [8, 8], strides = [1, 1]} : vector<8x32xbf16> to vector<8x8xbf16>
    %cst_16 = arith.constant dense<0.000000e+00> : vector<8x8xf32>
    %24 = tpu.matmul %21, %22, %cst_16 {dimension_numbers = #tpu.dot_dimension_numbers<[1], [1], [0], [0], [0, 0, 1, 0], [], []>} : vector<8x8xbf16>, vector<8x8xbf16>, vector<8x8xf32> -> vector<8x8xf32>
    %cst_17 = arith.constant 0.353553385 : f32
    %25 = vector.broadcast %cst_17 : f32 to vector<8x8xf32>
    %26 = arith.mulf %24, %25 : vector<8x8xf32>
    %27 = arith.addf %26, %20 : vector<8x8xf32>
    %cst_18 = arith.constant dense<0xFF800000> : vector<8xf32>
    %28 = vector.multi_reduction <maximumf>, %27, %cst_18 [1] : vector<8x8xf32> to vector<8xf32>
    %29 = vector.shape_cast %28 : vector<8xf32> to vector<8x1xf32>
    %30 = vector.broadcast %29 : vector<8x1xf32> to vector<8x8xf32>
    %31 = arith.subf %27, %30 : vector<8x8xf32>
    %32 = math.exp %31 : vector<8x8xf32>
    %cst_19 = arith.constant dense<0.000000e+00> : vector<8xf32>
    %33 = vector.multi_reduction <add>, %32, %cst_19 [1] : vector<8x8xf32> to vector<8xf32>
    %34 = vector.shape_cast %33 : vector<8xf32> to vector<8x1xf32>
    %35 = vector.broadcast %34 : vector<8x1xf32> to vector<8x8xf32>
    %36 = arith.divf %32, %35 : vector<8x8xf32>
    %c0_20 = arith.constant 0 : index
    %c0_21 = arith.constant 0 : index
    %c0_22 = arith.constant 0 : index
    %c0_23 = arith.constant 0 : index
    %37 = vector.load %arg10[%c0_20, %c0_21, %c0_22, %c0_23] : memref<1x4x8x8xf32, #tpu.memory_space<vmem>>, vector<1x1x8x8xf32>
    %38 = vector.shape_cast %37 : vector<1x1x8x8xf32> to vector<8x8xf32>
    %39 = vector.shape_cast %36 : vector<8x8xf32> to vector<1x1x8x8xf32>
    tpu.vector_store %arg10[%c0_20, %c0_21, %c0_22, %c0_23], %39 {strides = array<i32>} : memref<1x4x8x8xf32, #tpu.memory_space<vmem>>, vector<1x1x8x8xf32>,
    %40 = arith.truncf %36 : vector<8x8xf32> to vector<8x8xbf16>
    %cst_24 = arith.constant dense<0.000000e+00> : vector<8x8xf32>
    %41 = tpu.matmul %40, %23, %cst_24 {dimension_numbers = #tpu.dot_dimension_numbers<[1], [0], [0], [1], [0, 0, 1, 1], [], []>} : vector<8x8xbf16>, vector<8x8xbf16>, vector<8x8xf32> -> vector<8x8xf32>
    %42 = vector.extract_strided_slice %12 {offsets = [0, 8], sizes = [8, 8], strides = [1, 1]} : vector<8x32xbf16> to vector<8x8xbf16>
    %43 = vector.extract_strided_slice %13 {offsets = [0, 8], sizes = [8, 8], strides = [1, 1]} : vector<8x32xbf16> to vector<8x8xbf16>
    %44 = vector.extract_strided_slice %14 {offsets = [0, 8], sizes = [8, 8], strides = [1, 1]} : vector<8x32xbf16> to vector<8x8xbf16>
    %cst_25 = arith.constant dense<0.000000e+00> : vector<8x8xf32>
    %45 = tpu.matmul %42, %43, %cst_25 {dimension_numbers = #tpu.dot_dimension_numbers<[1], [1], [0], [0], [0, 0, 1, 0], [], []>} : vector<8x8xbf16>, vector<8x8xbf16>, vector<8x8xf32> -> vector<8x8xf32>
    %cst_26 = arith.constant 0.353553385 : f32
    %46 = vector.broadcast %cst_26 : f32 to vector<8x8xf32>
    %47 = arith.mulf %45, %46 : vector<8x8xf32>
    %48 = arith.addf %47, %20 : vector<8x8xf32>
    %cst_27 = arith.constant dense<0xFF800000> : vector<8xf32>
    %49 = vector.multi_reduction <maximumf>, %48, %cst_27 [1] : vector<8x8xf32> to vector<8xf32>
    %50 = vector.shape_cast %49 : vector<8xf32> to vector<8x1xf32>
    %51 = vector.broadcast %50 : vector<8x1xf32> to vector<8x8xf32>
    %52 = arith.subf %48, %51 : vector<8x8xf32>
    %53 = math.exp %52 : vector<8x8xf32>
    %cst_28 = arith.constant dense<0.000000e+00> : vector<8xf32>
    %54 = vector.multi_reduction <add>, %53, %cst_28 [1] : vector<8x8xf32> to vector<8xf32>
    %55 = vector.shape_cast %54 : vector<8xf32> to vector<8x1xf32>
    %56 = vector.broadcast %55 : vector<8x1xf32> to vector<8x8xf32>
    %57 = arith.divf %53, %56 : vector<8x8xf32>
    %c0_29 = arith.constant 0 : index
    %c1 = arith.constant 1 : index
    %c0_30 = arith.constant 0 : index
    %c0_31 = arith.constant 0 : index
    %58 = vector.load %arg10[%c0_29, %c1, %c0_30, %c0_31] : memref<1x4x8x8xf32, #tpu.memory_space<vmem>>, vector<1x1x8x8xf32>
    %59 = vector.shape_cast %58 : vector<1x1x8x8xf32> to vector<8x8xf32>
    %60 = vector.shape_cast %57 : vector<8x8xf32> to vector<1x1x8x8xf32>
    tpu.vector_store %arg10[%c0_29, %c1, %c0_30, %c0_31], %60 {strides = array<i32>} : memref<1x4x8x8xf32, #tpu.memory_space<vmem>>, vector<1x1x8x8xf32>,
    %61 = arith.truncf %57 : vector<8x8xf32> to vector<8x8xbf16>
    %cst_32 = arith.constant dense<0.000000e+00> : vector<8x8xf32>
    %62 = tpu.matmul %61, %44, %cst_32 {dimension_numbers = #tpu.dot_dimension_numbers<[1], [0], [0], [1], [0, 0, 1, 1], [], []>} : vector<8x8xbf16>, vector<8x8xbf16>, vector<8x8xf32> -> vector<8x8xf32>
    %63 = vector.extract_strided_slice %12 {offsets = [0, 16], sizes = [8, 8], strides = [1, 1]} : vector<8x32xbf16> to vector<8x8xbf16>
    %64 = vector.extract_strided_slice %13 {offsets = [0, 16], sizes = [8, 8], strides = [1, 1]} : vector<8x32xbf16> to vector<8x8xbf16>
    %65 = vector.extract_strided_slice %14 {offsets = [0, 16], sizes = [8, 8], strides = [1, 1]} : vector<8x32xbf16> to vector<8x8xbf16>
    %cst_33 = arith.constant dense<0.000000e+00> : vector<8x8xf32>
    %66 = tpu.matmul %63, %64, %cst_33 {dimension_numbers = #tpu.dot_dimension_numbers<[1], [1], [0], [0], [0, 0, 1, 0], [], []>} : vector<8x8xbf16>, vector<8x8xbf16>, vector<8x8xf32> -> vector<8x8xf32>
    %cst_34 = arith.constant 0.353553385 : f32
    %67 = vector.broadcast %cst_34 : f32 to vector<8x8xf32>
    %68 = arith.mulf %66, %67 : vector<8x8xf32>
    %69 = arith.addf %68, %20 : vector<8x8xf32>
    %cst_35 = arith.constant dense<0xFF800000> : vector<8xf32>
    %70 = vector.multi_reduction <maximumf>, %69, %cst_35 [1] : vector<8x8xf32> to vector<8xf32>
    %71 = vector.shape_cast %70 : vector<8xf32> to vector<8x1xf32>
    %72 = vector.broadcast %71 : vector<8x1xf32> to vector<8x8xf32>
    %73 = arith.subf %69, %72 : vector<8x8xf32>
    %74 = math.exp %73 : vector<8x8xf32>
    %cst_36 = arith.constant dense<0.000000e+00> : vector<8xf32>
    %75 = vector.multi_reduction <add>, %74, %cst_36 [1] : vector<8x8xf32> to vector<8xf32>
    %76 = vector.shape_cast %75 : vector<8xf32> to vector<8x1xf32>
    %77 = vector.broadcast %76 : vector<8x1xf32> to vector<8x8xf32>
    %78 = arith.divf %74, %77 : vector<8x8xf32>
    %c0_37 = arith.constant 0 : index
    %c2 = arith.constant 2 : index
    %c0_38 = arith.constant 0 : index
    %c0_39 = arith.constant 0 : index
    %79 = vector.load %arg10[%c0_37, %c2, %c0_38, %c0_39] : memref<1x4x8x8xf32, #tpu.memory_space<vmem>>, vector<1x1x8x8xf32>
    %80 = vector.shape_cast %79 : vector<1x1x8x8xf32> to vector<8x8xf32>
    %81 = vector.shape_cast %78 : vector<8x8xf32> to vector<1x1x8x8xf32>
    tpu.vector_store %arg10[%c0_37, %c2, %c0_38, %c0_39], %81 {strides = array<i32>} : memref<1x4x8x8xf32, #tpu.memory_space<vmem>>, vector<1x1x8x8xf32>,
    %82 = arith.truncf %78 : vector<8x8xf32> to vector<8x8xbf16>
    %cst_40 = arith.constant dense<0.000000e+00> : vector<8x8xf32>
    %83 = tpu.matmul %82, %65, %cst_40 {dimension_numbers = #tpu.dot_dimension_numbers<[1], [0], [0], [1], [0, 0, 1, 1], [], []>} : vector<8x8xbf16>, vector<8x8xbf16>, vector<8x8xf32> -> vector<8x8xf32>
    %84 = vector.extract_strided_slice %12 {offsets = [0, 24], sizes = [8, 8], strides = [1, 1]} : vector<8x32xbf16> to vector<8x8xbf16>
    %85 = vector.extract_strided_slice %13 {offsets = [0, 24], sizes = [8, 8], strides = [1, 1]} : vector<8x32xbf16> to vector<8x8xbf16>
    %86 = vector.extract_strided_slice %14 {offsets = [0, 24], sizes = [8, 8], strides = [1, 1]} : vector<8x32xbf16> to vector<8x8xbf16>
    %cst_41 = arith.constant dense<0.000000e+00> : vector<8x8xf32>
    %87 = tpu.matmul %84, %85, %cst_41 {dimension_numbers = #tpu.dot_dimension_numbers<[1], [1], [0], [0], [0, 0, 1, 0], [], []>} : vector<8x8xbf16>, vector<8x8xbf16>, vector<8x8xf32> -> vector<8x8xf32>
    %cst_42 = arith.constant 0.353553385 : f32
    %88 = vector.broadcast %cst_42 : f32 to vector<8x8xf32>
    %89 = arith.mulf %87, %88 : vector<8x8xf32>
    %90 = arith.addf %89, %20 : vector<8x8xf32>
    %cst_43 = arith.constant dense<0xFF800000> : vector<8xf32>
    %91 = vector.multi_reduction <maximumf>, %90, %cst_43 [1] : vector<8x8xf32> to vector<8xf32>
    %92 = vector.shape_cast %91 : vector<8xf32> to vector<8x1xf32>
    %93 = vector.broadcast %92 : vector<8x1xf32> to vector<8x8xf32>
    %94 = arith.subf %90, %93 : vector<8x8xf32>
    %95 = math.exp %94 : vector<8x8xf32>
    %cst_44 = arith.constant dense<0.000000e+00> : vector<8xf32>
    %96 = vector.multi_reduction <add>, %95, %cst_44 [1] : vector<8x8xf32> to vector<8xf32>
    %97 = vector.shape_cast %96 : vector<8xf32> to vector<8x1xf32>
    %98 = vector.broadcast %97 : vector<8x1xf32> to vector<8x8xf32>
    %99 = arith.divf %95, %98 : vector<8x8xf32>
    %c0_45 = arith.constant 0 : index
    %c3 = arith.constant 3 : index
    %c0_46 = arith.constant 0 : index
    %c0_47 = arith.constant 0 : index
    %100 = vector.load %arg10[%c0_45, %c3, %c0_46, %c0_47] : memref<1x4x8x8xf32, #tpu.memory_space<vmem>>, vector<1x1x8x8xf32>
    %101 = vector.shape_cast %100 : vector<1x1x8x8xf32> to vector<8x8xf32>
    %102 = vector.shape_cast %99 : vector<8x8xf32> to vector<1x1x8x8xf32>
    tpu.vector_store %arg10[%c0_45, %c3, %c0_46, %c0_47], %102 {strides = array<i32>} : memref<1x4x8x8xf32, #tpu.memory_space<vmem>>, vector<1x1x8x8xf32>,
    %103 = arith.truncf %99 : vector<8x8xf32> to vector<8x8xbf16>
    %cst_48 = arith.constant dense<0.000000e+00> : vector<8x8xf32>
    %104 = tpu.matmul %103, %86, %cst_48 {dimension_numbers = #tpu.dot_dimension_numbers<[1], [0], [0], [1], [0, 0, 1, 1], [], []>} : vector<8x8xbf16>, vector<8x8xbf16>, vector<8x8xf32> -> vector<8x8xf32>
    %105 = tpu.concatenate %41, %62, %83, %104 in 1 : vector<8x8xf32>, vector<8x8xf32>, vector<8x8xf32>, vector<8x8xf32> -> vector<8x32xf32>
    %106 = arith.truncf %105 : vector<8x32xf32> to vector<8x32xbf16>
    %c0_49 = arith.constant 0 : index
    %c0_50 = arith.constant 0 : index
    %c0_51 = arith.constant 0 : index
    %107 = vector.load %arg9[%c0_49, %c0_50, %c0_51] : memref<1x8x32xbf16, #tpu.memory_space<vmem>>, vector<1x8x32xbf16>
    %108 = vector.shape_cast %107 : vector<1x8x32xbf16> to vector<8x32xbf16>
    %109 = vector.shape_cast %106 : vector<8x32xbf16> to vector<1x8x32xbf16>
    tpu.vector_store %arg9[%c0_49, %c0_50, %c0_51], %109 {strides = array<i32>} : memref<1x8x32xbf16, #tpu.memory_space<vmem>>, vector<1x8x32xbf16>,
    return
  }
  func.func @transform_0(%arg0: i32, %arg1: i32) -> (i32, i32, i32) {
    %c0_i32 = arith.constant 0 : i32
    %c0_i32_0 = arith.constant 0 : i32
    return %arg0, %arg1, %c0_i32 : i32, i32, i32
  }
  func.func @transform_1(%arg0: i32, %arg1: i32) -> (i32, i32, i32) {
    %c0_i32 = arith.constant 0 : i32
    %c0_i32_0 = arith.constant 0 : i32
    %c0_i32_1 = arith.constant 0 : i32
    return %arg0, %c0_i32, %c0_i32_0 : i32, i32, i32
  }
  func.func @transform_2(%arg0: i32, %arg1: i32) -> (i32, i32, i32, i32) {
    %c0_i32 = arith.constant 0 : i32
    %c0_i32_0 = arith.constant 0 : i32
    %c0_i32_1 = arith.constant 0 : i32
    return %arg0, %c0_i32, %arg1, %c0_i32_0 : i32, i32, i32, i32
  }
  func.func @transform_3(%arg0: i32, %arg1: i32) -> (i32, i32) {
    %c0_i32 = arith.constant 0 : i32
    %c0_i32_0 = arith.constant 0 : i32
    %c0_i32_1 = arith.constant 0 : i32
    return %c0_i32, %c0_i32_0 : i32, i32
  }
  func.func @transform_4(%arg0: i32, %arg1: i32) -> (i32, i32) {
    %c0_i32 = arith.constant 0 : i32
    %c0_i32_0 = arith.constant 0 : i32
    %c0_i32_1 = arith.constant 0 : i32
    return %c0_i32, %c0_i32_0 : i32, i32
  }
  func.func @transform_5(%arg0: i32, %arg1: i32) -> (i32, i32) {
    %c0_i32 = arith.constant 0 : i32
    %c0_i32_0 = arith.constant 0 : i32
    %c0_i32_1 = arith.constant 0 : i32
    return %c0_i32, %c0_i32_0 : i32, i32
  }
  func.func @transform_6(%arg0: i32, %arg1: i32) -> (i32, i32) {
    %c0_i32 = arith.constant 0 : i32
    %c0_i32_0 = arith.constant 0 : i32
    %c0_i32_1 = arith.constant 0 : i32
    return %c0_i32, %c0_i32_0 : i32, i32
  }
  func.func @transform_7(%arg0: i32, %arg1: i32) -> (i32, i32, i32) {
    %c0_i32 = arith.constant 0 : i32
    %c0_i32_0 = arith.constant 0 : i32
    return %arg0, %arg1, %c0_i32 : i32, i32, i32
  }
  func.func @transform_8(%arg0: i32, %arg1: i32) -> (i32, i32, i32, i32) {
    %c0_i32 = arith.constant 0 : i32
    %c0_i32_0 = arith.constant 0 : i32
    %c0_i32_1 = arith.constant 0 : i32
    return %arg0, %c0_i32, %arg1, %c0_i32_0 : i32, i32, i32, i32
  }
}

</mosaic_0001>

<llo_original>
// kernel: decoder_block.6
$region0: #{decoder_block.6}
  #allocation0 [shape = 'u32[]', space=smem, size = 0x4, offset = 0x4, fixed_abs, tag = 'smem constant byte address 0x4 - core index']
  #allocation1 [shape = 'u32[144,128]{1,0:T(1,128)}', space=vmem, size = 0x12000, scoped, tag = 'internal scratch']
  %s0 = inlined_call_operand.hbm [shape: bf16[16,32], index: 0, kind: input, shape index: {}]
  %s1 = inlined_call_operand.hbm [shape: f32[16,32], index: 1, kind: input, shape index: {}]
  %s2 = inlined_call_operand.hbm [shape: bf16[32,32], index: 2, kind: input, shape index: {}]
  %s3 = inlined_call_operand.hbm [shape: bf16[1,32], index: 3, kind: input, shape index: {}]
  %s4 = inlined_call_operand.hbm [shape: f32[1,32], index: 4, kind: input, shape index: {}]
  %s5 = inlined_call_operand.hbm [shape: f32[1,32], index: 5, kind: input, shape index: {}]
  %s6 = inlined_call_operand.hbm [shape: f32[16,32], index: 6, kind: output, shape index: {}]
  %s7 = sld [smem:[#allocation0]]
  $region58: #{decoder_block.6} parent=0
    _
  %s9 = ssub.s32 1, %s7
  %s10 = scalar_select 0, %s9, %s7
  $region1: #{decoder_block.6} parent=0
    #allocation2 [shape = 'u8[4096]{0}', space=vmem, size = 0x1000, scoped, tag = 'input window, operand 0, single buffered']
    #allocation3 [shape = 's32[1]{0}', space=sflag, size = 0x4, scoped, tag = 'scoped memory for decoder_block.6']
    #allocation4 [shape = 's32[1]{0}', space=sflag, size = 0x4, scoped, tag = 'scoped memory for decoder_block.6']
    #allocation5 [shape = 'u8[8192]{0}', space=vmem, size = 0x2000, scoped, tag = 'input window, operand 1, single buffered']
    #allocation6 [shape = 's32[1]{0}', space=sflag, size = 0x4, scoped, tag = 'scoped memory for decoder_block.6']
    #allocation7 [shape = 'u8[8192]{0}', space=vmem, size = 0x2000, scoped, tag = 'input window, operand 2, single buffered']
    #allocation8 [shape = 'u8[512]{0}', space=vmem, size = 0x400, scoped, tag = 'input window, operand 3, single buffered']
    #allocation9 [shape = 's32[1]{0}', space=sflag, size = 0x4, scoped, tag = 'scoped memory for decoder_block.6']
    #allocation10 [shape = 'u8[512]{0}', space=vmem, size = 0x400, scoped, tag = 'input window, operand 4, single buffered']
    #allocation11 [shape = 'u8[512]{0}', space=vmem, size = 0x400, scoped, tag = 'input window, operand 5, single buffered']
    #allocation12 [shape = 's32[1]{0}', space=sflag, size = 0x4, scoped, tag = 'scoped memory for decoder_block.6']
    #allocation13 [shape = 'u8[8192]{0}', space=vmem, size = 0x2000, scoped, tag = 'output window, operand 0, single buffered']
    %11 = vsyncpa [#allocation3], 0
    %12 = vsyncpa [#allocation6], 0
    %13 = vsyncpa [#allocation9], 0
    %14 = vsyncpa [#allocation12], 0
    %15 = vsyncpa [#allocation4], 0
    // Predicated region
    $region2: #{decoder_block.6} parent=1 // pred_check
      _
    $region3: #{decoder_block.6} parent=1 // pred_check_branch
      %17 = sbr.rel (0) target = $region5
    $region4: #{decoder_block.6} parent=1 // pred_region
      %s19 = ssub.s32 128, 128
      %20 = vsyncadd [#allocation3], %s19
      %s21 = sshll.u32 [#allocation2], 4
      %s22 = int_to_ptr.vmem [resolvable:$true] %s21
      %27 = dma.hbm_to_vmem [thread:$0]  %s0, 128, %s22, [#allocation3], 64, 64, 4
    $region5: #{decoder_block.6} parent=1 // pred_fallthru
      _
    // Predicated region
    $region6: #{decoder_block.6} parent=1 // pred_check
      _
    $region7: #{decoder_block.6} parent=1 // pred_check_branch
      %29 = sbr.rel (0) target = $region9
    $region8: #{decoder_block.6} parent=1 // pred_region
      %s31 = ssub.s32 256, 256
      %32 = vsyncadd [#allocation6], %s31
      %s33 = sshll.u32 [#allocation5], 4
      %s34 = int_to_ptr.vmem [resolvable:$true] %s33
      %39 = dma.hbm_to_vmem [thread:$0]  %s1, 256, %s34, [#allocation6], 128, 128, 8
    $region9: #{decoder_block.6} parent=1 // pred_fallthru
      _
    // Predicated region
    $region10: #{decoder_block.6} parent=1 // pred_check
      _
    $region11: #{decoder_block.6} parent=1 // pred_check_branch
      %41 = sbr.rel (0) target = $region13
    $region12: #{decoder_block.6} parent=1 // pred_region
      %s43 = ssub.s32 256, 256
      %44 = vsyncadd [#allocation6], %s43
      %s45 = sshll.u32 [#allocation7], 4
      %s46 = int_to_ptr.vmem [resolvable:$true] %s45
      %51 = dma.hbm_to_vmem [thread:$0]  %s2, 256, %s46, [#allocation6], 64, 64, 4
    $region13: #{decoder_block.6} parent=1 // pred_fallthru
      _
    // Predicated region
    $region14: #{decoder_block.6} parent=1 // pred_check
      _
    $region15: #{decoder_block.6} parent=1 // pred_check_branch
      %53 = sbr.rel (0) target = $region17
    $region16: #{decoder_block.6} parent=1 // pred_region
      %s55 = ssub.s32 16, 16
      %56 = vsyncadd [#allocation9], %s55
      %s58 = sshll.u32 [#allocation8], 4
      %s59 = int_to_ptr.vmem [resolvable:$true] %s58
      %61 = dma.hbm_to_vmem [thread:$0]  %s3, 16, %s59, [#allocation9]
    $region17: #{decoder_block.6} parent=1 // pred_fallthru
      _
    // Predicated region
    $region18: #{decoder_block.6} parent=1 // pred_check
      _
    $region19: #{decoder_block.6} parent=1 // pred_check_branch
      %63 = sbr.rel (0) target = $region21
    $region20: #{decoder_block.6} parent=1 // pred_region
      %s65 = ssub.s32 16, 16
      %66 = vsyncadd [#allocation9], %s65
      %s68 = sshll.u32 [#allocation10], 4
      %s69 = int_to_ptr.vmem [resolvable:$true] %s68
      %71 = dma.hbm_to_vmem [thread:$0]  %s4, 16, %s69, [#allocation9]
    $region21: #{decoder_block.6} parent=1 // pred_fallthru
      _
    // Predicated region
    $region22: #{decoder_block.6} parent=1 // pred_check
      _
    $region23: #{decoder_block.6} parent=1 // pred_check_branch
      %73 = sbr.rel (0) target = $region25
    $region24: #{decoder_block.6} parent=1 // pred_region
      %s75 = ssub.s32 16, 16
      %76 = vsyncadd [#allocation12], %s75
      %s78 = sshll.u32 [#allocation11], 4
      %s79 = int_to_ptr.vmem [resolvable:$true] %s78
      %81 = dma.hbm_to_vmem [thread:$0]  %s5, 16, %s79, [#allocation12]
    $region25: #{decoder_block.6} parent=1 // pred_fallthru
      _
    // Predicated region
    $region26: #{decoder_block.6} parent=1 // pred_check
      _
    $region27: #{decoder_block.6} parent=1 // pred_check_branch
      %83 = sbr.rel (0) target = $region29
    $region28: #{decoder_block.6} parent=1 // pred_region
      %84 = dma.done [#allocation3], 128
    $region29: #{decoder_block.6} parent=1 // pred_fallthru
      _
    // Predicated region
    $region30: #{decoder_block.6} parent=1 // pred_check
      _
    $region31: #{decoder_block.6} parent=1 // pred_check_branch
      %86 = sbr.rel (0) target = $region33
    $region32: #{decoder_block.6} parent=1 // pred_region
      %87 = dma.done [#allocation6], 256
    $region33: #{decoder_block.6} parent=1 // pred_fallthru
      _
    // Predicated region
    $region34: #{decoder_block.6} parent=1 // pred_check
      _
    $region35: #{decoder_block.6} parent=1 // pred_check_branch
      %89 = sbr.rel (0) target = $region37
    $region36: #{decoder_block.6} parent=1 // pred_region
      %90 = dma.done [#allocation6], 256
    $region37: #{decoder_block.6} parent=1 // pred_fallthru
      _
    // Predicated region
    $region38: #{decoder_block.6} parent=1 // pred_check
      _
    $region39: #{decoder_block.6} parent=1 // pred_check_branch
      %92 = sbr.rel (0) target = $region41
    $region40: #{decoder_block.6} parent=1 // pred_region
      %93 = dma.done [#allocation9], 16
    $region41: #{decoder_block.6} parent=1 // pred_fallthru
      _
    // Predicated region
    $region42: #{decoder_block.6} parent=1 // pred_check
      _
    $region43: #{decoder_block.6} parent=1 // pred_check_branch
      %95 = sbr.rel (0) target = $region45
    $region44: #{decoder_block.6} parent=1 // pred_region
      %96 = dma.done [#allocation9], 16
    $region45: #{decoder_block.6} parent=1 // pred_fallthru
      _
    // Predicated region
    $region46: #{decoder_block.6} parent=1 // pred_check
      _
    $region47: #{decoder_block.6} parent=1 // pred_check_branch
      %98 = sbr.rel (0) target = $region49
    $region48: #{decoder_block.6} parent=1 // pred_region
      %99 = dma.done [#allocation12], 16
    $region49: #{decoder_block.6} parent=1 // pred_fallthru
      _
    %v101 = vld [vmem:[#allocation2] sm:$0xf]
    %v102 = vld [vmem:[#allocation2 + $0x4] sm:$0xf]
    %v103 = vld [vmem:[#allocation7] sm:$0xf]
    %v104 = vld [vmem:[#allocation7 + $0x4] sm:$0xf]
    %v105 = vld [vmem:[#allocation7 + $0x8] sm:$0xf]
    %v106 = vld [vmem:[#allocation7 + $0xc] sm:$0xf]
    %v107 = vld [vmem:[#allocation8] sm:$0x1]
    %v108 = vunpack.c.l.bf16 %v107
    %v109 = vlaneseq
    %v110 = vshrl.u32 %v109, 7
    %v111 = vsub.s32 0, %v110
    %v112 = vrot.slane %v108, %v111
    %v115 = vunpack.c.l.b16 %v101
    %v116 = vunpack.c.l.b16 %v102
    %v117 = vpack.c.b16 %v116, %v115
    %v122 = vunpack.c.l.b16 %v103
    %v123 = vunpack.c.l.b16 %v104
    %v124 = vunpack.c.l.b16 %v105
    %v125 = vunpack.c.l.b16 %v106
    %v126 = vpack.c.b16 %v123, %v122
    %v127 = vpack.c.b16 %v125, %v124
    %vm130 = vcmask 261120
    %v132 = vsel %vm130, %v117, 0
    %134 = vmatprep.subr.bf16.mxu0 0
    %135 = vmatpush1.bf16.msra.mxu0 %v126
    %136 = vmatprep.subr.bf16.mxu0 0
    %137 = vmatpush1.bf16.msra.mxu0 %v127
    %138 = vmatprep.subr.bf16.mxu0 0
    %139 = vmatpush1.bf16.msra.mxu0 0
    %140 = vmatprep.subr.bf16.mxu0 0
    %141 = vmatpush1.bf16.msra.mxu0 0
    %142 = vmatprep.subr.bf16.mxu0 0
    %143 = vmatpush1.bf16.msra.mxu0 0
    %144 = vmatprep.subr.bf16.mxu0 0
    %145 = vmatpush1.bf16.msra.mxu0 0
    %146 = vmatprep.subr.bf16.mxu0 0
    %147 = vmatpush1.bf16.msra.mxu0 0
    %148 = vmatprep.subr.bf16.mxu0 0
    %149 = vmatpush1.bf16.msra.mxu0 0
    %150 = vmatprep.subr.bf16.mxu0 0
    %151 = vmatpush1.bf16.msra.mxu0 0
    %152 = vmatprep.subr.bf16.mxu0 0
    %153 = vmatpush1.bf16.msra.mxu0 0
    %154 = vmatprep.subr.bf16.mxu0 0
    %155 = vmatpush1.bf16.msra.mxu0 0
    %156 = vmatprep.subr.bf16.mxu0 0
    %157 = vmatpush1.bf16.msra.mxu0 0
    %158 = vmatprep.subr.bf16.mxu0 0
    %159 = vmatpush1.bf16.msra.mxu0 0
    %160 = vmatprep.subr.bf16.mxu0 0
    %161 = vmatpush1.bf16.msra.mxu0 0
    %162 = vmatprep.subr.bf16.mxu0 0
    %163 = vmatpush1.bf16.msra.mxu0 0
    %164 = vmatprep.subr.bf16.mxu0 0
    %165 = vmatpush1.bf16.msra.mxu0 0
    %166 = vmatprep.mubr.bf16.mxu0 0
    %167 = vmatmul.mubr.bf16.gmra.mrb[0].mxu0 %v132
    %v168 = vpop.f32.mrb[0].mxu0
    %v169 = vadd.f32 %v112, %v168
    %v170 = vpop.f32.mrb[0].mxu0
    %v171 = vpop.f32.mrb[0].mxu0
    %v172 = vadd.f32 %v112, %v171
    %v173 = vpop.f32.mrb[0].mxu0
    %174 = vdwg.mxu0
    %v175 = vld [vmem:[#allocation5] sm:$0xff]
    %v176 = vld [vmem:[#allocation5 + $0x8] sm:$0xff]
    %v177 = vadd.f32 %v169, %v175
    %v178 = vadd.f32 %v172, %v176
    %v179 = vld [vmem:[#allocation10] sm:$0x1]
    %v180 = vld [vmem:[#allocation11] sm:$0x1]
    %v181 = vsel %vm130, %v177, 0.0
    %182 = vadd.xlane.f32.xlu0 %v181
    %v183 = vpop.xlane.xlu0 %182
    %v184 = vsel %vm130, %v178, 0.0
    %185 = vadd.xlane.f32.xlu0 %v184
    %v186 = vpop.xlane.xlu0 %185
    %v187 = vrcp.pop 32.0
    %v188 = vmul.f32 %v183, %v187
    %v189 = vmul.f32 %v186, %v187
    %v190 = vsub.f32 %v177, %v188
    %v191 = vsub.f32 %v178, %v189
    %v192 = vmul.f32 %v190, %v190
    %v193 = vmul.f32 %v191, %v191
    %v194 = vsel %vm130, %v192, 0.0
    %195 = vadd.xlane.f32.xlu0 %v194
    %v196 = vpop.xlane.xlu0 %195
    %v197 = vsel %vm130, %v193, 0.0
    %198 = vadd.xlane.f32.xlu0 %v197
    %v199 = vpop.xlane.xlu0 %198
    %v200 = vmul.f32 %v196, %v187
    %v201 = vmul.f32 %v199, %v187
    %v202 = vadd.f32 %v200, 1e-05
    %v203 = vadd.f32 %v201, 1e-05
    %v204 = vrsqrt.pop %v202
    %v205 = vrsqrt.pop %v203
    %v206 = vmul.f32 %v190, %v204
    %v207 = vmul.f32 %v191, %v205
    %v209 = vlaneseq
    %v210 = vshrl.u32 %v209, 7
    %v211 = vsub.s32 0, %v210
    %v212 = vrot.slane %v179, %v211
    %v214 = vmul.f32 %v206, %v212
    %v215 = vmul.f32 %v207, %v212
    %v217 = vlaneseq
    %v218 = vshrl.u32 %v217, 7
    %v219 = vsub.s32 0, %v218
    %v220 = vrot.slane %v180, %v219
    %v222 = vadd.f32 %v214, %v220
    %v223 = vadd.f32 %v215, %v220
    %224 = vst.msk [vmem:[#allocation13] sm:$0xff] %vm130, %v222
    %225 = vst.msk [vmem:[#allocation13 + $0x8] sm:$0xff] %vm130, %v223
    // Predicated region
    $region50: #{decoder_block.6} parent=1 // pred_check
      _
    $region51: #{decoder_block.6} parent=1 // pred_check_branch
      %227 = sbr.rel (0) target = $region53
    $region52: #{decoder_block.6} parent=1 // pred_region
      %s229 = ssub.s32 256, 256
      %230 = vsyncadd [#allocation4], %s229
      %s231 = sshll.u32 [#allocation13], 4
      %s232 = int_to_ptr.vmem [resolvable:$true] %s231
      %237 = dma.vmem_to_hbm [thread:$0]  %s232, 256, %s6, [#allocation4], 128, 128, 8
    $region53: #{decoder_block.6} parent=1 // pred_fallthru
      _
    // Predicated region
    $region54: #{decoder_block.6} parent=1 // pred_check
      _
    $region55: #{decoder_block.6} parent=1 // pred_check_branch
      %239 = sbr.rel (0) target = $region57
    $region56: #{decoder_block.6} parent=1 // pred_region
      %240 = dma.done [#allocation4], 256
    $region57: #{decoder_block.6} parent=1 // pred_fallthru
      _
    %241 = vsyncpa [#allocation3], 1
    %242 = vsyncpa [#allocation6], 1
    %243 = vsyncpa [#allocation9], 1
    %244 = vsyncpa [#allocation12], 1
    %245 = vsyncpa [#allocation4], 1

// kernel: decoder_block.9
$region0: #{decoder_block.9}
  #allocation0 [shape = 'u32[]', space=smem, size = 0x4, offset = 0x4, fixed_abs, tag = 'smem constant byte address 0x4 - core index']
  #allocation1 [shape = 'u32[144,128]{1,0:T(1,128)}', space=vmem, size = 0x12000, scoped, tag = 'internal scratch']
  #allocation2 [shape = 'f32[16,32]{1,0:T(8,128)}', space=vmem, size = 0x2000, scoped, tag = 'scratch operand']
  %s0 = inlined_call_operand.hbm [shape: f32[16,32], index: 0, kind: input, shape index: {}]
  %s1 = inlined_call_operand.hbm [shape: bf16[32,64], index: 1, kind: input, shape index: {}]
  %s2 = inlined_call_operand.hbm [shape: bf16[1,64], index: 2, kind: input, shape index: {}]
  %s3 = inlined_call_operand.hbm [shape: bf16[64,32], index: 3, kind: input, shape index: {}]
  %s4 = inlined_call_operand.hbm [shape: bf16[1,32], index: 4, kind: input, shape index: {}]
  %s5 = inlined_call_operand.hbm [shape: f32[1,32], index: 5, kind: input, shape index: {}]
  %s6 = inlined_call_operand.hbm [shape: f32[1,32], index: 6, kind: input, shape index: {}]
  %s7 = inlined_call_operand.hbm [shape: f32[16,32], index: 7, kind: output, shape index: {}]
  %s8 = sld [smem:[#allocation0]]
  $region74: #{decoder_block.9} parent=0
    _
  %s10 = ssub.s32 1, %s8
  %s11 = scalar_select 0, %s10, %s8
  $region1: #{decoder_block.9} parent=0
    #allocation3 [shape = 'u8[8192]{0}', space=vmem, size = 0x2000, scoped, tag = 'input window, operand 0, single buffered']
    #allocation4 [shape = 's32[1]{0}', space=sflag, size = 0x4, scoped, tag = 'scoped memory for decoder_block.9']
    #allocation5 [shape = 's32[1]{0}', space=sflag, size = 0x4, scoped, tag = 'scoped memory for decoder_block.9']
    #allocation6 [shape = 'u8[8192]{0}', space=vmem, size = 0x2000, scoped, tag = 'input window, operand 1, single buffered']
    #allocation7 [shape = 's32[1]{0}', space=sflag, size = 0x4, scoped, tag = 'scoped memory for decoder_block.9']
    #allocation8 [shape = 'u8[512]{0}', space=vmem, size = 0x400, scoped, tag = 'input window, operand 2, single buffered']
    #allocation9 [shape = 'u8[16384]{0}', space=vmem, size = 0x4000, scoped, tag = 'input window, operand 3, single buffered']
    #allocation10 [shape = 's32[1]{0}', space=sflag, size = 0x4, scoped, tag = 'scoped memory for decoder_block.9']
    #allocation11 [shape = 'u8[512]{0}', space=vmem, size = 0x400, scoped, tag = 'input window, operand 4, single buffered']
    #allocation12 [shape = 'u8[512]{0}', space=vmem, size = 0x400, scoped, tag = 'input window, operand 5, single buffered']
    #allocation13 [shape = 's32[1]{0}', space=sflag, size = 0x4, scoped, tag = 'scoped memory for decoder_block.9']
    #allocation14 [shape = 'u8[512]{0}', space=vmem, size = 0x400, scoped, tag = 'input window, operand 6, single buffered']
    #allocation15 [shape = 'u8[8192]{0}', space=vmem, size = 0x2000, scoped, tag = 'output window, operand 0, single buffered']
    %12 = vsyncpa [#allocation4], 0
    %13 = vsyncpa [#allocation7], 0
    %14 = vsyncpa [#allocation10], 0
    %15 = vsyncpa [#allocation13], 0
    %16 = vsyncpa [#allocation5], 0
    // Predicated region
    $region2: #{decoder_block.9} parent=1 // pred_check
      _
    $region3: #{decoder_block.9} parent=1 // pred_check_branch
      %18 = sbr.rel (0) target = $region5
    $region4: #{decoder_block.9} parent=1 // pred_region
      %s20 = ssub.s32 256, 256
      %21 = vsyncadd [#allocation4], %s20
      %s22 = sshll.u32 [#allocation3], 4
      %s23 = int_to_ptr.vmem [resolvable:$true] %s22
      %28 = dma.hbm_to_vmem [thread:$0]  %s0, 256, %s23, [#allocation4], 128, 128, 8
    $region5: #{decoder_block.9} parent=1 // pred_fallthru
      _
    // Predicated region
    $region6: #{decoder_block.9} parent=1 // pred_check
      _
    $region7: #{decoder_block.9} parent=1 // pred_check_branch
      %30 = sbr.rel (0) target = $region9
    $region8: #{decoder_block.9} parent=1 // pred_region
      %s32 = ssub.s32 256, 256
      %33 = vsyncadd [#allocation7], %s32
      %s34 = sshll.u32 [#allocation6], 4
      %s35 = int_to_ptr.vmem [resolvable:$true] %s34
      %40 = dma.hbm_to_vmem [thread:$0]  %s1, 256, %s35, [#allocation7], 64, 64, 4
    $region9: #{decoder_block.9} parent=1 // pred_fallthru
      _
    // Predicated region
    $region10: #{decoder_block.9} parent=1 // pred_check
      _
    $region11: #{decoder_block.9} parent=1 // pred_check_branch
      %42 = sbr.rel (0) target = $region13
    $region12: #{decoder_block.9} parent=1 // pred_region
      %s44 = ssub.s32 16, 16
      %45 = vsyncadd [#allocation7], %s44
      %s47 = sshll.u32 [#allocation8], 4
      %s48 = int_to_ptr.vmem [resolvable:$true] %s47
      %50 = dma.hbm_to_vmem [thread:$0]  %s2, 16, %s48, [#allocation7]
    $region13: #{decoder_block.9} parent=1 // pred_fallthru
      _
    // Predicated region
    $region14: #{decoder_block.9} parent=1 // pred_check
      _
    $region15: #{decoder_block.9} parent=1 // pred_check_branch
      %52 = sbr.rel (0) target = $region17
    $region16: #{decoder_block.9} parent=1 // pred_region
      %s54 = ssub.s32 512, 512
      %55 = vsyncadd [#allocation10], %s54
      %s56 = sshll.u32 [#allocation9], 4
      %s57 = int_to_ptr.vmem [resolvable:$true] %s56
      %62 = dma.hbm_to_vmem [thread:$0]  %s3, 512, %s57, [#allocation10], 64, 64, 4
    $region17: #{decoder_block.9} parent=1 // pred_fallthru
      _
    // Predicated region
    $region18: #{decoder_block.9} parent=1 // pred_check
      _
    $region19: #{decoder_block.9} parent=1 // pred_check_branch
      %64 = sbr.rel (0) target = $region21
    $region20: #{decoder_block.9} parent=1 // pred_region
      %s66 = ssub.s32 16, 16
      %67 = vsyncadd [#allocation10], %s66
      %s69 = sshll.u32 [#allocation11], 4
      %s70 = int_to_ptr.vmem [resolvable:$true] %s69
      %72 = dma.hbm_to_vmem [thread:$0]  %s4, 16, %s70, [#allocation10]
    $region21: #{decoder_block.9} parent=1 // pred_fallthru
      _
    // Predicated region
    $region22: #{decoder_block.9} parent=1 // pred_check
      _
    $region23: #{decoder_block.9} parent=1 // pred_check_branch
      %74 = sbr.rel (0) target = $region25
    $region24: #{decoder_block.9} parent=1 // pred_region
      %s76 = ssub.s32 16, 16
      %77 = vsyncadd [#allocation13], %s76
      %s79 = sshll.u32 [#allocation12], 4
      %s80 = int_to_ptr.vmem [resolvable:$true] %s79
      %82 = dma.hbm_to_vmem [thread:$0]  %s5, 16, %s80, [#allocation13]
    $region25: #{decoder_block.9} parent=1 // pred_fallthru
      _
    // Predicated region
    $region26: #{decoder_block.9} parent=1 // pred_check
      _
    $region27: #{decoder_block.9} parent=1 // pred_check_branch
      %84 = sbr.rel (0) target = $region29
    $region28: #{decoder_block.9} parent=1 // pred_region
      %s86 = ssub.s32 16, 16
      %87 = vsyncadd [#allocation13], %s86
      %s89 = sshll.u32 [#allocation14], 4
      %s90 = int_to_ptr.vmem [resolvable:$true] %s89
      %92 = dma.hbm_to_vmem [thread:$0]  %s6, 16, %s90, [#allocation13]
    $region29: #{decoder_block.9} parent=1 // pred_fallthru
      _
    // Predicated region
    $region30: #{decoder_block.9} parent=1 // pred_check
      _
    $region31: #{decoder_block.9} parent=1 // pred_check_branch
      %94 = sbr.rel (0) target = $region33
    $region32: #{decoder_block.9} parent=1 // pred_region
      %95 = dma.done [#allocation4], 256
    $region33: #{decoder_block.9} parent=1 // pred_fallthru
      _
    // Predicated region
    $region34: #{decoder_block.9} parent=1 // pred_check
      _
    $region35: #{decoder_block.9} parent=1 // pred_check_branch
      %97 = sbr.rel (0) target = $region37
    $region36: #{decoder_block.9} parent=1 // pred_region
      %98 = dma.done [#allocation7], 256
    $region37: #{decoder_block.9} parent=1 // pred_fallthru
      _
    // Predicated region
    $region38: #{decoder_block.9} parent=1 // pred_check
      _
    $region39: #{decoder_block.9} parent=1 // pred_check_branch
      %100 = sbr.rel (0) target = $region41
    $region40: #{decoder_block.9} parent=1 // pred_region
      %101 = dma.done [#allocation7], 16
    $region41: #{decoder_block.9} parent=1 // pred_fallthru
      _
    // Predicated region
    $region42: #{decoder_block.9} parent=1 // pred_check
      _
    $region43: #{decoder_block.9} parent=1 // pred_check_branch
      %103 = sbr.rel (0) target = $region45
    $region44: #{decoder_block.9} parent=1 // pred_region
      %104 = dma.done [#allocation10], 512
    $region45: #{decoder_block.9} parent=1 // pred_fallthru
      _
    // Predicated region
    $region46: #{decoder_block.9} parent=1 // pred_check
      _
    $region47: #{decoder_block.9} parent=1 // pred_check_branch
      %106 = sbr.rel (0) target = $region49
    $region48: #{decoder_block.9} parent=1 // pred_region
      %107 = dma.done [#allocation10], 16
    $region49: #{decoder_block.9} parent=1 // pred_fallthru
      _
    // Predicated region
    $region50: #{decoder_block.9} parent=1 // pred_check
      _
    $region51: #{decoder_block.9} parent=1 // pred_check_branch
      %109 = sbr.rel (0) target = $region53
    $region52: #{decoder_block.9} parent=1 // pred_region
      %110 = dma.done [#allocation13], 16
    $region53: #{decoder_block.9} parent=1 // pred_fallthru
      _
    // Predicated region
    $region54: #{decoder_block.9} parent=1 // pred_check
      _
    $region55: #{decoder_block.9} parent=1 // pred_check_branch
      %112 = sbr.rel (0) target = $region57
    $region56: #{decoder_block.9} parent=1 // pred_region
      %113 = dma.done [#allocation13], 16
    $region57: #{decoder_block.9} parent=1 // pred_fallthru
      _
    %p115 = scmp.eq.s32.totalorder 0, 0
    // Predicated region
    $region58: #{decoder_block.9} parent=1 // pred_check
      %p116 = pneg %p115
    $region59: #{decoder_block.9} parent=1 // pred_check_branch
      %118 = sbr.rel (%p116) target = $region61
    $region60: #{decoder_block.9} parent=1 // pred_region
      %vm119 = vcmask 261120
      %120 = vst.msk [vmem:[#allocation2] sm:$0xff] %vm119, 0.0
      %121 = vst.msk [vmem:[#allocation2 + $0x8] sm:$0xff] %vm119, 0.0
    $region61: #{decoder_block.9} parent=1 // pred_fallthru
      _
    %v122 = vld [vmem:[#allocation3] sm:$0xff]
    %v123 = vld [vmem:[#allocation3 + $0x8] sm:$0xff]
    %v124 = vpack.c.bf16 %v123, %v122
    %v125 = vld [vmem:[#allocation6] sm:$0xf]
    %v126 = vld [vmem:[#allocation6 + $0x4] sm:$0xf]
    %v127 = vld [vmem:[#allocation6 + $0x8] sm:$0xf]
    %v128 = vld [vmem:[#allocation6 + $0xc] sm:$0xf]
    %v129 = vld [vmem:[#allocation8] sm:$0x1]
    %v130 = vunpack.c.l.bf16 %v129
    %v131 = vlaneseq
    %v132 = vshrl.u32 %v131, 7
    %v133 = vsub.s32 0, %v132
    %v134 = vrot.slane %v130, %v133
    %v139 = vunpack.c.l.b16 %v125
    %v140 = vunpack.c.l.b16 %v126
    %v141 = vunpack.c.l.b16 %v127
    %v142 = vunpack.c.l.b16 %v128
    %v143 = vpack.c.b16 %v140, %v139
    %v144 = vpack.c.b16 %v142, %v141
    %vm147 = vcmask 261120
    %v149 = vsel %vm147, %v124, 0
    %151 = vmatprep.subr.bf16.mxu0 0
    %152 = vmatpush1.bf16.msra.mxu0 %v143
    %153 = vmatprep.subr.bf16.mxu0 0
    %154 = vmatpush1.bf16.msra.mxu0 %v144
    %155 = vmatprep.subr.bf16.mxu0 0
    %156 = vmatpush1.bf16.msra.mxu0 0
    %157 = vmatprep.subr.bf16.mxu0 0
    %158 = vmatpush1.bf16.msra.mxu0 0
    %159 = vmatprep.subr.bf16.mxu0 0
    %160 = vmatpush1.bf16.msra.mxu0 0
    %161 = vmatprep.subr.bf16.mxu0 0
    %162 = vmatpush1.bf16.msra.mxu0 0
    %163 = vmatprep.subr.bf16.mxu0 0
    %164 = vmatpush1.bf16.msra.mxu0 0
    %165 = vmatprep.subr.bf16.mxu0 0
    %166 = vmatpush1.bf16.msra.mxu0 0
    %167 = vmatprep.subr.bf16.mxu0 0
    %168 = vmatpush1.bf16.msra.mxu0 0
    %169 = vmatprep.subr.bf16.mxu0 0
    %170 = vmatpush1.bf16.msra.mxu0 0
    %171 = vmatprep.subr.bf16.mxu0 0
    %172 = vmatpush1.bf16.msra.mxu0 0
    %173 = vmatprep.subr.bf16.mxu0 0
    %174 = vmatpush1.bf16.msra.mxu0 0
    %175 = vmatprep.subr.bf16.mxu0 0
    %176 = vmatpush1.bf16.msra.mxu0 0
    %177 = vmatprep.subr.bf16.mxu0 0
    %178 = vmatpush1.bf16.msra.mxu0 0
    %179 = vmatprep.subr.bf16.mxu0 0
    %180 = vmatpush1.bf16.msra.mxu0 0
    %181 = vmatprep.subr.bf16.mxu0 0
    %182 = vmatpush1.bf16.msra.mxu0 0
    %183 = vmatprep.mubr.bf16.mxu0 0
    %184 = vmatmul.mubr.bf16.gmra.mrb[0].mxu0 %v149
    %v185 = vpop.f32.mrb[0].mxu0
    %v186 = vadd.f32 %v134, %v185
    %v187 = vpop.f32.mrb[0].mxu0
    %v188 = vpop.f32.mrb[0].mxu0
    %v189 = vadd.f32 %v134, %v188
    %v190 = vpop.f32.mrb[0].mxu0
    %191 = vdwg.mxu0
    %v192 = vmax.f32 %v186, 0.0
    %v193 = vmax.f32 %v189, 0.0
    %v194 = vpack.c.bf16 %v193, %v192
    %v195 = vld [vmem:[#allocation2] sm:$0xff]
    %v196 = vld [vmem:[#allocation2 + $0x8] sm:$0xff]
    %v197 = vld [vmem:[#allocation9] sm:$0xf]
    %v198 = vld [vmem:[#allocation9 + $0x4] sm:$0xf]
    %v199 = vld [vmem:[#allocation9 + $0x8] sm:$0xf]
    %v200 = vld [vmem:[#allocation9 + $0xc] sm:$0xf]
    %v201 = vld [vmem:[#allocation9 + $0x10] sm:$0xf]
    %v202 = vld [vmem:[#allocation9 + $0x14] sm:$0xf]
    %v203 = vld [vmem:[#allocation9 + $0x18] sm:$0xf]
    %v204 = vld [vmem:[#allocation9 + $0x1c] sm:$0xf]
    %v213 = vunpack.c.l.b16 %v197
    %v214 = vunpack.c.l.b16 %v198
    %v215 = vunpack.c.l.b16 %v199
    %v216 = vunpack.c.l.b16 %v200
    %v217 = vunpack.c.l.b16 %v201
    %v218 = vunpack.c.l.b16 %v202
    %v219 = vunpack.c.l.b16 %v203
    %v220 = vunpack.c.l.b16 %v204
    %v221 = vpack.c.b16 %v214, %v213
    %v222 = vpack.c.b16 %v216, %v215
    %v223 = vpack.c.b16 %v218, %v217
    %v224 = vpack.c.b16 %v220, %v219
    %vm229 = vcmask 523264
    %v231 = vsel %vm229, %v194, 0
    %233 = vmatprep.subr.bf16.mxu0 0
    %234 = vmatpush1.bf16.msra.mxu0 %v221
    %235 = vmatprep.subr.bf16.mxu0 0
    %236 = vmatpush1.bf16.msra.mxu0 %v222
    %237 = vmatprep.subr.bf16.mxu0 0
    %238 = vmatpush1.bf16.msra.mxu0 %v223
    %239 = vmatprep.subr.bf16.mxu0 0
    %240 = vmatpush1.bf16.msra.mxu0 %v224
    %241 = vmatprep.subr.bf16.mxu0 0
    %242 = vmatpush1.bf16.msra.mxu0 0
    %243 = vmatprep.subr.bf16.mxu0 0
    %244 = vmatpush1.bf16.msra.mxu0 0
    %245 = vmatprep.subr.bf16.mxu0 0
    %246 = vmatpush1.bf16.msra.mxu0 0
    %247 = vmatprep.subr.bf16.mxu0 0
    %248 = vmatpush1.bf16.msra.mxu0 0
    %249 = vmatprep.subr.bf16.mxu0 0
    %250 = vmatpush1.bf16.msra.mxu0 0
    %251 = vmatprep.subr.bf16.mxu0 0
    %252 = vmatpush1.bf16.msra.mxu0 0
    %253 = vmatprep.subr.bf16.mxu0 0
    %254 = vmatpush1.bf16.msra.mxu0 0
    %255 = vmatprep.subr.bf16.mxu0 0
    %256 = vmatpush1.bf16.msra.mxu0 0
    %257 = vmatprep.subr.bf16.mxu0 0
    %258 = vmatpush1.bf16.msra.mxu0 0
    %259 = vmatprep.subr.bf16.mxu0 0
    %260 = vmatpush1.bf16.msra.mxu0 0
    %261 = vmatprep.subr.bf16.mxu0 0
    %262 = vmatpush1.bf16.msra.mxu0 0
    %263 = vmatprep.subr.bf16.mxu0 0
    %264 = vmatpush1.bf16.msra.mxu0 0
    %265 = vmatprep.mubr.bf16.mxu0 0
    %266 = vmatmul.mubr.bf16.gmra.mrb[0].mxu0 %v231
    %v267 = vpop.f32.mrb[0].mxu0
    %v268 = vadd.f32 0.0, %v267
    %v269 = vpop.f32.mrb[0].mxu0
    %v270 = vpop.f32.mrb[0].mxu0
    %v271 = vadd.f32 0.0, %v270
    %v272 = vpop.f32.mrb[0].mxu0
    %273 = vdwg.mxu0
    %v274 = vadd.f32 %v195, %v268
    %v275 = vadd.f32 %v196, %v271
    %276 = vst.msk [vmem:[#allocation2] sm:$0xff] %vm147, %v274
    %277 = vst.msk [vmem:[#allocation2 + $0x8] sm:$0xff] %vm147, %v275
    // Predicated region
    $region62: #{decoder_block.9} parent=1 // pred_check
      %p278 = pneg %p115
    $region63: #{decoder_block.9} parent=1 // pred_check_branch
      %280 = sbr.rel (%p278) target = $region65
    $region64: #{decoder_block.9} parent=1 // pred_region
      %v281 = vld [vmem:[#allocation2] sm:$0xff]
      %v282 = vld [vmem:[#allocation2 + $0x8] sm:$0xff]
      %v283 = vld [vmem:[#allocation11] sm:$0x1]
      %v284 = vunpack.c.l.bf16 %v283
      %v285 = vlaneseq
      %v286 = vshrl.u32 %v285, 7
      %v287 = vsub.s32 0, %v286
      %v288 = vrot.slane %v284, %v287
      %v289 = vadd.f32 %v281, %v288
      %v290 = vadd.f32 %v282, %v288
      %v291 = vld [vmem:[#allocation12] sm:$0x1]
      %v292 = vld [vmem:[#allocation14] sm:$0x1]
      %v293 = vsel %vm147, %v289, 0.0
      %294 = vadd.xlane.f32.xlu0 %v293
      %v295 = vpop.xlane.xlu0 %294
      %v296 = vsel %vm147, %v290, 0.0
      %297 = vadd.xlane.f32.xlu0 %v296
      %v298 = vpop.xlane.xlu0 %297
      %v299 = vrcp.pop 32.0
      %v300 = vmul.f32 %v295, %v299
      %v301 = vmul.f32 %v298, %v299
      %v302 = vsub.f32 %v289, %v300
      %v303 = vsub.f32 %v290, %v301
      %v304 = vmul.f32 %v302, %v302
      %v305 = vmul.f32 %v303, %v303
      %v306 = vsel %vm147, %v304, 0.0
      %307 = vadd.xlane.f32.xlu0 %v306
      %v308 = vpop.xlane.xlu0 %307
      %v309 = vsel %vm147, %v305, 0.0
      %310 = vadd.xlane.f32.xlu0 %v309
      %v311 = vpop.xlane.xlu0 %310
      %v312 = vmul.f32 %v308, %v299
      %v313 = vmul.f32 %v311, %v299
      %v314 = vadd.f32 %v312, 1e-05
      %v315 = vadd.f32 %v313, 1e-05
      %v316 = vrsqrt.pop %v314
      %v317 = vrsqrt.pop %v315
      %v318 = vmul.f32 %v302, %v316
      %v319 = vmul.f32 %v303, %v317
      %v321 = vlaneseq
      %v322 = vshrl.u32 %v321, 7
      %v323 = vsub.s32 0, %v322
      %v324 = vrot.slane %v291, %v323
      %v326 = vmul.f32 %v318, %v324
      %v327 = vmul.f32 %v319, %v324
      %v329 = vlaneseq
      %v330 = vshrl.u32 %v329, 7
      %v331 = vsub.s32 0, %v330
      %v332 = vrot.slane %v292, %v331
      %v334 = vadd.f32 %v326, %v332
      %v335 = vadd.f32 %v327, %v332
      %336 = vst.msk [vmem:[#allocation15] sm:$0xff] %vm147, %v334
      %337 = vst.msk [vmem:[#allocation15 + $0x8] sm:$0xff] %vm147, %v335
    $region65: #{decoder_block.9} parent=1 // pred_fallthru
      _
    // Predicated region
    $region66: #{decoder_block.9} parent=1 // pred_check
      _
    $region67: #{decoder_block.9} parent=1 // pred_check_branch
      %339 = sbr.rel (0) target = $region69
    $region68: #{decoder_block.9} parent=1 // pred_region
      %s341 = ssub.s32 256, 256
      %342 = vsyncadd [#allocation5], %s341
      %s343 = sshll.u32 [#allocation15], 4
      %s344 = int_to_ptr.vmem [resolvable:$true] %s343
      %349 = dma.vmem_to_hbm [thread:$0]  %s344, 256, %s7, [#allocation5], 128, 128, 8
    $region69: #{decoder_block.9} parent=1 // pred_fallthru
      _
    // Predicated region
    $region70: #{decoder_block.9} parent=1 // pred_check
      _
    $region71: #{decoder_block.9} parent=1 // pred_check_branch
      %351 = sbr.rel (0) target = $region73
    $region72: #{decoder_block.9} parent=1 // pred_region
      %352 = dma.done [#allocation5], 256
    $region73: #{decoder_block.9} parent=1 // pred_fallthru
      _
    %353 = vsyncpa [#allocation4], 1
    %354 = vsyncpa [#allocation7], 1
    %355 = vsyncpa [#allocation10], 1
    %356 = vsyncpa [#allocation13], 1
    %357 = vsyncpa [#allocation5], 1

// kernel: decoder_block.5
$region0: #{decoder_block.5}
  #allocation0 [shape = 'u32[]', space=smem, size = 0x4, offset = 0x4, fixed_abs, tag = 'smem constant byte address 0x4 - core index']
  #allocation1 [shape = 'u32[144,128]{1,0:T(1,128)}', space=vmem, size = 0x12000, scoped, tag = 'internal scratch']
  #allocation2 [shape = 'bf16[8,64]{1,0:T(8,128)(2,1)}', space=vmem, size = 0x800, scoped, tag = 'scratch operand']
  %s0 = inlined_call_operand.hbm [shape: f32[2,8,32], index: 0, kind: input, shape index: {}, may-alias: {0,1}]
  %s1 = inlined_call_operand.hbm [shape: f32[2,8,32], index: 1, kind: input, shape index: {}, may-alias: {0,1}]
  %s2 = inlined_call_operand.hbm [shape: f32[2,1,8,8], index: 2, kind: input, shape index: {}]
  %s3 = inlined_call_operand.hbm [shape: bf16[32,32], index: 3, kind: input, shape index: {}]
  %s4 = inlined_call_operand.hbm [shape: bf16[1,32], index: 4, kind: input, shape index: {}]
  %s5 = inlined_call_operand.hbm [shape: bf16[32,64], index: 5, kind: input, shape index: {}]
  %s6 = inlined_call_operand.hbm [shape: bf16[1,64], index: 6, kind: input, shape index: {}]
  %s7 = inlined_call_operand.hbm [shape: bf16[2,8,32], index: 7, kind: output, shape index: {0}]
  %s8 = inlined_call_operand.hbm [shape: f32[2,4,8,8], index: 8, kind: output, shape index: {1}]
  %9 = xla_tuple %s7, %s8
  %s10 = sld [smem:[#allocation0]]
  $region101: #{decoder_block.5} parent=0
    _
  %s12 = ssub.s32 1, %s10
  %s13 = scalar_select 0, %s12, %s10
  $region1: #{decoder_block.5} parent=0
    #allocation3 [shape = 'u8[8192]{0}', space=vmem, size = 0x2000, scoped, tag = 'input window, operand 0']
    #allocation4 [shape = 's32[2]{0}', space=sflag, size = 0x8, scoped, tag = 'scoped memory for decoder_block.5']
    #allocation5 [shape = 's32[2]{0}', space=sflag, size = 0x8, scoped, tag = 'scoped memory for decoder_block.5']
    #allocation6 [shape = 'u8[8192]{0}', space=vmem, size = 0x2000, scoped, tag = 'input window, operand 1']
    #allocation7 [shape = 's32[2]{0}', space=sflag, size = 0x8, scoped, tag = 'scoped memory for decoder_block.5']
    #allocation8 [shape = 'u8[8192]{0}', space=vmem, size = 0x2000, scoped, tag = 'input window, operand 2']
    #allocation9 [shape = 'u8[8192]{0}', space=vmem, size = 0x2000, scoped, tag = 'input window, operand 3, single buffered']
    #allocation10 [shape = 's32[1]{0}', space=sflag, size = 0x4, scoped, tag = 'scoped memory for decoder_block.5']
    #allocation11 [shape = 'u8[512]{0}', space=vmem, size = 0x400, scoped, tag = 'input window, operand 4, single buffered']
    #allocation12 [shape = 'u8[8192]{0}', space=vmem, size = 0x2000, scoped, tag = 'input window, operand 5, single buffered']
    #allocation13 [shape = 's32[1]{0}', space=sflag, size = 0x4, scoped, tag = 'scoped memory for decoder_block.5']
    #allocation14 [shape = 'u8[512]{0}', space=vmem, size = 0x400, scoped, tag = 'input window, operand 6, single buffered']
    #allocation15 [shape = 'u8[4096]{0}', space=vmem, size = 0x1000, scoped, tag = 'output window, operand 0']
    #allocation16 [shape = 'u8[32768]{0}', space=vmem, size = 0x8000, scoped, tag = 'output window, operand 1']
    #allocation17 [shape = 's32[2]{0}', space=sflag, size = 0x8, scoped, tag = 'scoped memory for decoder_block.5']
    %14 = vsyncpa [#allocation4], 0
    %s15 = scalar_lea.sflag [#allocation4], 1
    %16 = vsyncpa %s15, 0
    %17 = vsyncpa [#allocation7], 0
    %s18 = scalar_lea.sflag [#allocation7], 1
    %19 = vsyncpa %s18, 0
    %20 = vsyncpa [#allocation10], 0
    %21 = vsyncpa [#allocation13], 0
    %22 = vsyncpa [#allocation5], 0
    %s23 = scalar_lea.sflag [#allocation5], 1
    %24 = vsyncpa %s23, 0
    %25 = vsyncpa [#allocation17], 0
    %s26 = scalar_lea.sflag [#allocation17], 1
    %27 = vsyncpa %s26, 0
    loop: start=0, step=1, limit=4
    $region2: #{decoder_block.5} parent=1 // loop_pre_header
      _
    $region3: #{decoder_block.5} parent=1 // loop_header
      %s29 = sphi 0, %s33
      %p30 = scmp.ge.s32.totalorder %s29, 4
      %s36 = sphi 0, %s48
      %s37 = sphi 0, %s44
      %s38 = sphi 0, %s36
      %s39 = sphi 0, %s37
      %s40 = sphi 0, %s38
      %s41 = sphi 0, %s39
      %s53 = sphi 0, %s55
      %s56 = sphi 0, %s53
      %s57 = sphi 0, %s56
      %s73 = sphi 0, %s57
      %s79 = sphi 0, %s81
      %s82 = sphi 0, %s79
      %s83 = sphi 0, %s82
      %s99 = sphi 0, %s83
      %s107 = sphi 0, %s109
      %s110 = sphi 0, %s107
      %s111 = sphi 0, %s110
      %s127 = sphi 0, %s111
      %s131 = sphi 0, %s131
      %s133 = sphi 0, %s131
      %s134 = sphi 0, %s133
      %s148 = sphi 0, %s134
      %s152 = sphi 0, %s152
      %s154 = sphi 0, %s152
      %s155 = sphi 0, %s154
      %s169 = sphi 0, %s155
      %s173 = sphi 0, %s173
      %s175 = sphi 0, %s173
      %s176 = sphi 0, %s175
      %s190 = sphi 0, %s176
      %s194 = sphi 0, %s194
      %s196 = sphi 0, %s194
      %s197 = sphi 0, %s196
      %s211 = sphi 0, %s197
      %s219 = sphi 0, %s221
      %s222 = sphi 0, %s219
      %s223 = sphi 0, %s222
      %s239 = sphi 0, %s223
      %s247 = sphi 0, %s249
      %s250 = sphi 0, %s247
      %s251 = sphi 0, %s250
      %s267 = sphi 0, %s251
    $region4: #{decoder_block.5} parent=1 // loop_header_branch
      %32 = sbr.rel (%p30) target = $region8
    $region5: #{decoder_block.5} parent=1 // loop_body
      %s34 = ssub.s32 %s29, 1
      %s35 = ssub.s32 %s29, 2
      %s42 = sadd.s32 1, %s37
      %p43 = scmp.ge.s32.totalorder %s42, 1
      %s44 = scalar_select %p43, 0, %s42
      %s45 = sadd.s32 1, %s36
      %s46 = scalar_select %p43, %s45, %s36
      %p47 = scmp.ge.s32.totalorder %s46, 2
      %s48 = scalar_select %p47, 0, %s46
      %s49 = ssub.s32 %s36, %s48
      %s50 = ssub.s32 %s37, %s44
      %s51 = sor.u32 %s49, %s50
      %p52 = scmp.eq.s32.totalorder %s51, 0
      %s54 = sadd.s32 %s53, 1
      %s55 = scalar_select %p52, %s53, %s54
      %p58 = pneg %p52
      %p59 = scmp.eq.s32.totalorder %s29, 1
      %p60 = por %p58, %p59
      %p61 = scmp.ne.s32.totalorder %s53, %s56
      %p62 = scmp.eq.s32.totalorder %s29, 0
      %p63 = por %p61, %p62
      %p64 = scmp.ne.s32.totalorder %s53, %s56
      %p65 = scmp.eq.s32.totalorder %s34, 1
      %p66 = por %p64, %p65
      %p67 = scmp.ne.s32.totalorder %s56, %s57
      %p68 = scmp.eq.s32.totalorder %s34, 0
      %p69 = por %p67, %p68
      %p70 = scmp.ne.s32.totalorder %s56, %s57
      %p71 = scmp.eq.s32.totalorder %s35, 1
      %p72 = por %p70, %p71
      %p74 = scmp.ne.s32.totalorder %s57, %s73
      %p75 = scmp.eq.s32.totalorder %s35, 0
      %p76 = por %p74, %p75
      %s77 = ssub.s32 %s36, %s48
      %p78 = scmp.eq.s32.totalorder %s77, 0
      %s80 = sadd.s32 %s79, 1
      %s81 = scalar_select %p78, %s79, %s80
      %p84 = pneg %p78
      %p85 = scmp.eq.s32.totalorder %s29, 1
      %p86 = por %p84, %p85
      %p87 = scmp.ne.s32.totalorder %s79, %s82
      %p88 = scmp.eq.s32.totalorder %s29, 0
      %p89 = por %p87, %p88
      %p90 = scmp.ne.s32.totalorder %s79, %s82
      %p91 = scmp.eq.s32.totalorder %s34, 1
      %p92 = por %p90, %p91
      %p93 = scmp.ne.s32.totalorder %s82, %s83
      %p94 = scmp.eq.s32.totalorder %s34, 0
      %p95 = por %p93, %p94
      %p96 = scmp.ne.s32.totalorder %s82, %s83
      %p97 = scmp.eq.s32.totalorder %s35, 1
      %p98 = por %p96, %p97
      %p100 = scmp.ne.s32.totalorder %s83, %s99
      %p101 = scmp.eq.s32.totalorder %s35, 0
      %p102 = por %p100, %p101
      %s103 = ssub.s32 %s36, %s48
      %s104 = ssub.s32 %s37, %s44
      %s105 = sor.u32 %s103, %s104
      %p106 = scmp.eq.s32.totalorder %s105, 0
      %s108 = sadd.s32 %s107, 1
      %s109 = scalar_select %p106, %s107, %s108
      %p112 = pneg %p106
      %p113 = scmp.eq.s32.totalorder %s29, 1
      %p114 = por %p112, %p113
      %p115 = scmp.ne.s32.totalorder %s107, %s110
      %p116 = scmp.eq.s32.totalorder %s29, 0
      %p117 = por %p115, %p116
      %p118 = scmp.ne.s32.totalorder %s107, %s110
      %p119 = scmp.eq.s32.totalorder %s34, 1
      %p120 = por %p118, %p119
      %p121 = scmp.ne.s32.totalorder %s110, %s111
      %p122 = scmp.eq.s32.totalorder %s34, 0
      %p123 = por %p121, %p122
      %p124 = scmp.ne.s32.totalorder %s110, %s111
      %p125 = scmp.eq.s32.totalorder %s35, 1
      %p126 = por %p124, %p125
      %p128 = scmp.ne.s32.totalorder %s111, %s127
      %p129 = scmp.eq.s32.totalorder %s35, 0
      %p130 = por %p128, %p129
      %s132 = sadd.s32 %s131, 1
      %p135 = scmp.eq.s32.totalorder %s29, 1
      %p136 = scmp.ne.s32.totalorder %s131, %s133
      %p137 = scmp.eq.s32.totalorder %s29, 0
      %p138 = por %p136, %p137
      %p139 = scmp.ne.s32.totalorder %s131, %s133
      %p140 = scmp.eq.s32.totalorder %s34, 1
      %p141 = por %p139, %p140
      %p142 = scmp.ne.s32.totalorder %s133, %s134
      %p143 = scmp.eq.s32.totalorder %s34, 0
      %p144 = por %p142, %p143
      %p145 = scmp.ne.s32.totalorder %s133, %s134
      %p146 = scmp.eq.s32.totalorder %s35, 1
      %p147 = por %p145, %p146
      %p149 = scmp.ne.s32.totalorder %s134, %s148
      %p150 = scmp.eq.s32.totalorder %s35, 0
      %p151 = por %p149, %p150
      %s153 = sadd.s32 %s152, 1
      %p156 = scmp.eq.s32.totalorder %s29, 1
      %p157 = scmp.ne.s32.totalorder %s152, %s154
      %p158 = scmp.eq.s32.totalorder %s29, 0
      %p159 = por %p157, %p158
      %p160 = scmp.ne.s32.totalorder %s152, %s154
      %p161 = scmp.eq.s32.totalorder %s34, 1
      %p162 = por %p160, %p161
      %p163 = scmp.ne.s32.totalorder %s154, %s155
      %p164 = scmp.eq.s32.totalorder %s34, 0
      %p165 = por %p163, %p164
      %p166 = scmp.ne.s32.totalorder %s154, %s155
      %p167 = scmp.eq.s32.totalorder %s35, 1
      %p168 = por %p166, %p167
      %p170 = scmp.ne.s32.totalorder %s155, %s169
      %p171 = scmp.eq.s32.totalorder %s35, 0
      %p172 = por %p170, %p171
      %s174 = sadd.s32 %s173, 1
      %p177 = scmp.eq.s32.totalorder %s29, 1
      %p178 = scmp.ne.s32.totalorder %s173, %s175
      %p179 = scmp.eq.s32.totalorder %s29, 0
      %p180 = por %p178, %p179
      %p181 = scmp.ne.s32.totalorder %s173, %s175
      %p182 = scmp.eq.s32.totalorder %s34, 1
      %p183 = por %p181, %p182
      %p184 = scmp.ne.s32.totalorder %s175, %s176
      %p185 = scmp.eq.s32.totalorder %s34, 0
      %p186 = por %p184, %p185
      %p187 = scmp.ne.s32.totalorder %s175, %s176
      %p188 = scmp.eq.s32.totalorder %s35, 1
      %p189 = por %p187, %p188
      %p191 = scmp.ne.s32.totalorder %s176, %s190
      %p192 = scmp.eq.s32.totalorder %s35, 0
      %p193 = por %p191, %p192
      %s195 = sadd.s32 %s194, 1
      %p198 = scmp.eq.s32.totalorder %s29, 1
      %p199 = scmp.ne.s32.totalorder %s194, %s196
      %p200 = scmp.eq.s32.totalorder %s29, 0
      %p201 = por %p199, %p200
      %p202 = scmp.ne.s32.totalorder %s194, %s196
      %p203 = scmp.eq.s32.totalorder %s34, 1
      %p204 = por %p202, %p203
      %p205 = scmp.ne.s32.totalorder %s196, %s197
      %p206 = scmp.eq.s32.totalorder %s34, 0
      %p207 = por %p205, %p206
      %p208 = scmp.ne.s32.totalorder %s196, %s197
      %p209 = scmp.eq.s32.totalorder %s35, 1
      %p210 = por %p208, %p209
      %p212 = scmp.ne.s32.totalorder %s197, %s211
      %p213 = scmp.eq.s32.totalorder %s35, 0
      %p214 = por %p212, %p213
      %s215 = ssub.s32 %s36, %s48
      %s216 = ssub.s32 %s37, %s44
      %s217 = sor.u32 %s215, %s216
      %p218 = scmp.eq.s32.totalorder %s217, 0
      %s220 = sadd.s32 %s219, 1
      %s221 = scalar_select %p218, %s219, %s220
      %p224 = pneg %p218
      %p225 = scmp.eq.s32.totalorder %s29, 1
      %p226 = por %p224, %p225
      %p227 = scmp.ne.s32.totalorder %s219, %s222
      %p228 = scmp.eq.s32.totalorder %s29, 0
      %p229 = por %p227, %p228
      %p230 = scmp.ne.s32.totalorder %s219, %s222
      %p231 = scmp.eq.s32.totalorder %s34, 1
      %p232 = por %p230, %p231
      %p233 = scmp.ne.s32.totalorder %s222, %s223
      %p234 = scmp.eq.s32.totalorder %s34, 0
      %p235 = por %p233, %p234
      %p236 = scmp.ne.s32.totalorder %s222, %s223
      %p237 = scmp.eq.s32.totalorder %s35, 1
      %p238 = por %p236, %p237
      %p240 = scmp.ne.s32.totalorder %s223, %s239
      %p241 = scmp.eq.s32.totalorder %s35, 0
      %p242 = por %p240, %p241
      %s243 = ssub.s32 %s36, %s48
      %s244 = ssub.s32 %s37, %s44
      %s245 = sor.u32 %s243, %s244
      %p246 = scmp.eq.s32.totalorder %s245, 0
      %s248 = sadd.s32 %s247, 1
      %s249 = scalar_select %p246, %s247, %s248
      %p252 = pneg %p246
      %p253 = scmp.eq.s32.totalorder %s29, 1
      %p254 = por %p252, %p253
      %p255 = scmp.ne.s32.totalorder %s247, %s250
      %p256 = scmp.eq.s32.totalorder %s29, 0
      %p257 = por %p255, %p256
      %p258 = scmp.ne.s32.totalorder %s247, %s250
      %p259 = scmp.eq.s32.totalorder %s34, 1
      %p260 = por %p258, %p259
      %p261 = scmp.ne.s32.totalorder %s250, %s251
      %p262 = scmp.eq.s32.totalorder %s34, 0
      %p263 = por %p261, %p262
      %p264 = scmp.ne.s32.totalorder %s250, %s251
      %p265 = scmp.eq.s32.totalorder %s35, 1
      %p266 = por %p264, %p265
      %p268 = scmp.ne.s32.totalorder %s251, %s267
      %p269 = scmp.eq.s32.totalorder %s35, 0
      %p270 = por %p268, %p269
      %p271 = scmp.le.s32.totalorder 1, %s29
      %p272 = scmp.lt.s32.totalorder %s29, 3
      %p273 = pnand %p271, %p272
      %p274 = pneg %p273
      // Predicated region
      $region9: #{decoder_block.5} parent=5 // pred_check
        _
      $region10: #{decoder_block.5} parent=5 // pred_check_branch
        %276 = sbr.rel (%p273) target = $region12
      $region11: #{decoder_block.5} parent=5 // pred_region
        %s277 = ssub.s32 %s29, 1
        // Predicated region
        $region13: #{decoder_block.5} parent=11 // pred_check
          %p278 = pneg %p144
        $region14: #{decoder_block.5} parent=11 // pred_check_branch
          %280 = sbr.rel (%p278) target = $region16
        $region15: #{decoder_block.5} parent=11 // pred_region
          %s282 = ssub.s32 256, 256
          %283 = vsyncadd [#allocation10], %s282
          %s284 = sshll.u32 [#allocation9], 4
          %s285 = int_to_ptr.vmem [resolvable:$true] %s284
          %290 = dma.hbm_to_vmem [thread:$0]  %s3, 256, %s285, [#allocation10], 64, 64, 4
        $region16: #{decoder_block.5} parent=11 // pred_fallthru
          _
        // Predicated region
        $region17: #{decoder_block.5} parent=11 // pred_check
          %p291 = pneg %p165
        $region18: #{decoder_block.5} parent=11 // pred_check_branch
          %293 = sbr.rel (%p291) target = $region20
        $region19: #{decoder_block.5} parent=11 // pred_region
          %s295 = ssub.s32 16, 16
          %296 = vsyncadd [#allocation10], %s295
          %s298 = sshll.u32 [#allocation11], 4
          %s299 = int_to_ptr.vmem [resolvable:$true] %s298
          %301 = dma.hbm_to_vmem [thread:$0]  %s4, 16, %s299, [#allocation10]
        $region20: #{decoder_block.5} parent=11 // pred_fallthru
          _
        // Predicated region
        $region21: #{decoder_block.5} parent=11 // pred_check
          %p302 = pneg %p186
        $region22: #{decoder_block.5} parent=11 // pred_check_branch
          %304 = sbr.rel (%p302) target = $region24
        $region23: #{decoder_block.5} parent=11 // pred_region
          %s306 = ssub.s32 256, 256
          %307 = vsyncadd [#allocation13], %s306
          %s308 = sshll.u32 [#allocation12], 4
          %s309 = int_to_ptr.vmem [resolvable:$true] %s308
          %314 = dma.hbm_to_vmem [thread:$0]  %s5, 256, %s309, [#allocation13], 64, 64, 4
        $region24: #{decoder_block.5} parent=11 // pred_fallthru
          _
        // Predicated region
        $region25: #{decoder_block.5} parent=11 // pred_check
          %p315 = pneg %p207
        $region26: #{decoder_block.5} parent=11 // pred_check_branch
          %317 = sbr.rel (%p315) target = $region28
        $region27: #{decoder_block.5} parent=11 // pred_region
          %s319 = ssub.s32 16, 16
          %320 = vsyncadd [#allocation13], %s319
          %s322 = sshll.u32 [#allocation14], 4
          %s323 = int_to_ptr.vmem [resolvable:$true] %s322
          %325 = dma.hbm_to_vmem [thread:$0]  %s6, 16, %s323, [#allocation13]
        $region28: #{decoder_block.5} parent=11 // pred_fallthru
          _
      $region12: #{decoder_block.5} parent=5 // pred_fallthru
        _
      %p326 = scmp.lt.s32.totalorder %s29, 2
      // Predicated region
      $region29: #{decoder_block.5} parent=5 // pred_check
        %p327 = pneg %p326
      $region30: #{decoder_block.5} parent=5 // pred_check_branch
        %329 = sbr.rel (%p327) target = $region32
      $region31: #{decoder_block.5} parent=5 // pred_region
        // Predicated region
        $region33: #{decoder_block.5} parent=31 // pred_check
          %p330 = pneg %p63
        $region34: #{decoder_block.5} parent=31 // pred_check_branch
          %332 = sbr.rel (%p330) target = $region36
        $region35: #{decoder_block.5} parent=31 // pred_region
          %s333 = sand.u32 %s53, 1
          %s334 = scalar_lea.sflag [#allocation4], %s333
          %s335 = sand.u32 %s53, 1
          %s336 = smul.addr %s335, 8
          %s337 = scalar_lea.vmem [#allocation3], %s336
          %s339 = ssub.s32 128, 128
          %340 = vsyncadd %s334, %s339
          %s341 = sadd.s32 %s37, %s36
          %s342 = smul.addr %s341, 128
          %s343 = scalar_lea.hbm %s0, %s342
          %s345 = sshll.u32 %s337, 4
          %s346 = int_to_ptr.vmem [resolvable:$true] %s345
          %348 = dma.hbm_to_vmem [thread:$0]  %s343, 128, %s346, %s334
        $region36: #{decoder_block.5} parent=31 // pred_fallthru
          _
        // Predicated region
        $region37: #{decoder_block.5} parent=31 // pred_check
          %p349 = pneg %p89
        $region38: #{decoder_block.5} parent=31 // pred_check_branch
          %351 = sbr.rel (%p349) target = $region40
        $region39: #{decoder_block.5} parent=31 // pred_region
          %s352 = sand.u32 %s29, 1
          %s353 = scalar_lea.sflag [#allocation7], %s352
          %s354 = sand.u32 %s79, 1
          %s355 = smul.addr %s354, 8
          %s356 = scalar_lea.vmem [#allocation6], %s355
          %s358 = ssub.s32 128, 128
          %359 = vsyncadd %s353, %s358
          %s360 = smul.addr %s36, 128
          %s361 = scalar_lea.hbm %s1, %s360
          %s363 = sshll.u32 %s356, 4
          %s364 = int_to_ptr.vmem [resolvable:$true] %s363
          %366 = dma.hbm_to_vmem [thread:$0]  %s361, 128, %s364, %s353
        $region40: #{decoder_block.5} parent=31 // pred_fallthru
          _
        // Predicated region
        $region41: #{decoder_block.5} parent=31 // pred_check
          %p367 = pneg %p117
        $region42: #{decoder_block.5} parent=31 // pred_check_branch
          %369 = sbr.rel (%p367) target = $region44
        $region43: #{decoder_block.5} parent=31 // pred_region
          %s370 = sand.u32 %s29, 1
          %s371 = scalar_lea.sflag [#allocation7], %s370
          %s372 = sand.u32 %s107, 1
          %s373 = smul.addr %s372, 8
          %s374 = scalar_lea.vmem [#allocation8], %s373
          %s376 = ssub.s32 128, 128
          %377 = vsyncadd %s371, %s376
          %s378 = sadd.s32 %s37, %s36
          %s379 = smul.addr %s378, 128
          %s380 = scalar_lea.hbm %s2, %s379
          %s382 = sshll.u32 %s374, 4
          %s383 = int_to_ptr.vmem [resolvable:$true] %s382
          %385 = dma.hbm_to_vmem [thread:$0]  %s380, 128, %s383, %s371
        $region44: #{decoder_block.5} parent=31 // pred_fallthru
          _
      $region32: #{decoder_block.5} parent=5 // pred_fallthru
        _
      %p386 = scmp.le.s32.totalorder 1, %s29
      %p387 = scmp.lt.s32.totalorder %s29, 3
      %p388 = pnand %p386, %p387
      %p389 = pneg %p388
      // Predicated region
      $region45: #{decoder_block.5} parent=5 // pred_check
        _
      $region46: #{decoder_block.5} parent=5 // pred_check_branch
        %391 = sbr.rel (%p388) target = $region48
      $region47: #{decoder_block.5} parent=5 // pred_region
        %s392 = ssub.s32 %s29, 1
        %s393 = sand.u32 %s56, 1
        %s394 = scalar_lea.sflag [#allocation4], %s393
        %s395 = sand.u32 %s56, 1
        %s396 = smul.addr %s395, 8
        %s397 = scalar_lea.vmem [#allocation3], %s396
        // Predicated region
        $region49: #{decoder_block.5} parent=47 // pred_check
          %p398 = pneg %p69
        $region50: #{decoder_block.5} parent=47 // pred_check_branch
          %400 = sbr.rel (%p398) target = $region52
        $region51: #{decoder_block.5} parent=47 // pred_region
          %401 = dma.done %s394, 128
        $region52: #{decoder_block.5} parent=47 // pred_fallthru
          _
        %s402 = sand.u32 %s34, 1
        %s403 = scalar_lea.sflag [#allocation7], %s402
        %s404 = sand.u32 %s82, 1
        %s405 = smul.addr %s404, 8
        %s406 = scalar_lea.vmem [#allocation6], %s405
        // Predicated region
        $region53: #{decoder_block.5} parent=47 // pred_check
          %p407 = pneg %p95
        $region54: #{decoder_block.5} parent=47 // pred_check_branch
          %409 = sbr.rel (%p407) target = $region56
        $region55: #{decoder_block.5} parent=47 // pred_region
          %410 = dma.done %s403, 128
        $region56: #{decoder_block.5} parent=47 // pred_fallthru
          _
        %s411 = sand.u32 %s34, 1
        %s412 = scalar_lea.sflag [#allocation7], %s411
        %s413 = sand.u32 %s110, 1
        %s414 = smul.addr %s413, 8
        %s415 = scalar_lea.vmem [#allocation8], %s414
        // Predicated region
        $region57: #{decoder_block.5} parent=47 // pred_check
          %p416 = pneg %p123
        $region58: #{decoder_block.5} parent=47 // pred_check_branch
          %418 = sbr.rel (%p416) target = $region60
        $region59: #{decoder_block.5} parent=47 // pred_region
          %419 = dma.done %s412, 128
        $region60: #{decoder_block.5} parent=47 // pred_fallthru
          _
        // Predicated region
        $region61: #{decoder_block.5} parent=47 // pred_check
          %p420 = pneg %p144
        $region62: #{decoder_block.5} parent=47 // pred_check_branch
          %422 = sbr.rel (%p420) target = $region64
        $region63: #{decoder_block.5} parent=47 // pred_region
          %423 = dma.done [#allocation10], 256
        $region64: #{decoder_block.5} parent=47 // pred_fallthru
          _
        // Predicated region
        $region65: #{decoder_block.5} parent=47 // pred_check
          %p424 = pneg %p165
        $region66: #{decoder_block.5} parent=47 // pred_check_branch
          %426 = sbr.rel (%p424) target = $region68
        $region67: #{decoder_block.5} parent=47 // pred_region
          %427 = dma.done [#allocation10], 16
        $region68: #{decoder_block.5} parent=47 // pred_fallthru
          _
        // Predicated region
        $region69: #{decoder_block.5} parent=47 // pred_check
          %p428 = pneg %p186
        $region70: #{decoder_block.5} parent=47 // pred_check_branch
          %430 = sbr.rel (%p428) target = $region72
        $region71: #{decoder_block.5} parent=47 // pred_region
          %431 = dma.done [#allocation13], 256
        $region72: #{decoder_block.5} parent=47 // pred_fallthru
          _
        // Predicated region
        $region73: #{decoder_block.5} parent=47 // pred_check
          %p432 = pneg %p207
        $region74: #{decoder_block.5} parent=47 // pred_check_branch
          %434 = sbr.rel (%p432) target = $region76
        $region75: #{decoder_block.5} parent=47 // pred_region
          %435 = dma.done [#allocation13], 16
        $region76: #{decoder_block.5} parent=47 // pred_fallthru
          _
        %s436 = sand.u32 %s56, 1
        %s437 = scalar_lea.sflag [#allocation4], %s436
        %s438 = sand.u32 %s56, 1
        %s439 = smul.addr %s438, 8
        %s440 = scalar_lea.vmem [#allocation3], %s439
        %p441 = pneg %p69
        %p442 = pneg %p66
        %s443 = sand.u32 %s34, 1
        %s444 = scalar_lea.sflag [#allocation7], %s443
        %s445 = sand.u32 %s82, 1
        %s446 = smul.addr %s445, 8
        %s447 = scalar_lea.vmem [#allocation6], %s446
        %p448 = pneg %p95
        %p449 = pneg %p92
        %s450 = sand.u32 %s34, 1
        %s451 = scalar_lea.sflag [#allocation7], %s450
        %s452 = sand.u32 %s110, 1
        %s453 = smul.addr %s452, 8
        %s454 = scalar_lea.vmem [#allocation8], %s453
        %p455 = pneg %p123
        %p456 = pneg %p120
        %p457 = pneg %p144
        %p458 = pneg %p141
        %p459 = pneg %p165
        %p460 = pneg %p162
        %p461 = pneg %p186
        %p462 = pneg %p183
        %p463 = pneg %p207
        %p464 = pneg %p204
        %p465 = pneg %p235
        %p466 = pneg %p232
        %s467 = sand.u32 %s222, 1
        %s468 = scalar_lea.sflag [#allocation5], %s467
        %s469 = sand.u32 %s222, 1
        %s470 = smul.addr %s469, 4
        %s471 = scalar_lea.vmem [#allocation15], %s470
        %p472 = pneg %p263
        %p473 = pneg %p260
        %s474 = sand.u32 %s250, 1
        %s475 = scalar_lea.sflag [#allocation17], %s474
        %s476 = sand.u32 %s250, 1
        %s477 = smul.addr %s476, 32
        %s478 = scalar_lea.vmem [#allocation16], %s477
        %p480 = scmp.eq.s32.totalorder %s39, 0
        // Predicated region
        $region77: #{decoder_block.5} parent=47 // pred_check
          %p481 = pneg %p480
        $region78: #{decoder_block.5} parent=47 // pred_check_branch
          %483 = sbr.rel (%p481) target = $region80
        $region79: #{decoder_block.5} parent=47 // pred_region
          %v484 = vld [vmem:[%s406] sm:$0xff]
          %v485 = vpack.c.bf16 %v484, %v484
          %v486 = vld [vmem:[#allocation12] sm:$0xf]
          %v487 = vld [vmem:[#allocation12 + $0x4] sm:$0xf]
          %v488 = vld [vmem:[#allocation12 + $0x8] sm:$0xf]
          %v489 = vld [vmem:[#allocation12 + $0xc] sm:$0xf]
          %v490 = vld [vmem:[#allocation14] sm:$0x1]
          %v491 = vunpack.c.l.bf16 %v490
          %v492 = vlaneseq
          %v493 = vshrl.u32 %v492, 7
          %v494 = vsub.s32 0, %v493
          %v495 = vrot.slane %v491, %v494
          %v500 = vunpack.c.l.b16 %v486
          %v501 = vunpack.c.l.b16 %v487
          %v502 = vunpack.c.l.b16 %v488
          %v503 = vunpack.c.l.b16 %v489
          %v504 = vpack.c.b16 %v501, %v500
          %v505 = vpack.c.b16 %v503, %v502
          %vm508 = vcmask 261120
          %v510 = vsel %vm508, %v485, 0
          %512 = vmatprep.subr.bf16.mxu0 0
          %513 = vmatpush1.bf16.msra.mxu0 %v504
          %514 = vmatprep.subr.bf16.mxu0 0
          %515 = vmatpush1.bf16.msra.mxu0 %v505
          %516 = vmatprep.subr.bf16.mxu0 0
          %517 = vmatpush1.bf16.msra.mxu0 0
          %518 = vmatprep.subr.bf16.mxu0 0
          %519 = vmatpush1.bf16.msra.mxu0 0
          %520 = vmatprep.subr.bf16.mxu0 0
          %521 = vmatpush1.bf16.msra.mxu0 0
          %522 = vmatprep.subr.bf16.mxu0 0
          %523 = vmatpush1.bf16.msra.mxu0 0
          %524 = vmatprep.subr.bf16.mxu0 0
          %525 = vmatpush1.bf16.msra.mxu0 0
          %526 = vmatprep.subr.bf16.mxu0 0
          %527 = vmatpush1.bf16.msra.mxu0 0
          %528 = vmatprep.subr.bf16.mxu0 0
          %529 = vmatpush1.bf16.msra.mxu0 0
          %530 = vmatprep.subr.bf16.mxu0 0
          %531 = vmatpush1.bf16.msra.mxu0 0
          %532 = vmatprep.subr.bf16.mxu0 0
          %533 = vmatpush1.bf16.msra.mxu0 0
          %534 = vmatprep.subr.bf16.mxu0 0
          %535 = vmatpush1.bf16.msra.mxu0 0
          %536 = vmatprep.subr.bf16.mxu0 0
          %537 = vmatpush1.bf16.msra.mxu0 0
          %538 = vmatprep.subr.bf16.mxu0 0
          %539 = vmatpush1.bf16.msra.mxu0 0
          %540 = vmatprep.subr.bf16.mxu0 0
          %541 = vmatpush1.bf16.msra.mxu0 0
          %542 = vmatprep.subr.bf16.mxu0 0
          %543 = vmatpush1.bf16.msra.mxu0 0
          %544 = vmatprep.mubr.bf16.mxu0 0
          %545 = vmatmul.mubr.bf16.gmra.mrb[0].mxu0 %v510
          %v546 = vpop.f32.mrb[0].mxu0
          %v547 = vadd.f32 %v495, %v546
          %v548 = vpop.f32.mrb[0].mxu0
          %v549 = vpop.f32.mrb[0].mxu0
          %v550 = vpop.f32.mrb[0].mxu0
          %551 = vdwg.mxu0
          %v552 = vpack.c.bf16 %v547, %v547
          %vm553 = vcmask 519168
          %554 = vst.msk [vmem:[#allocation2] sm:$0xf] %vm553, %v552
        $region80: #{decoder_block.5} parent=47 // pred_fallthru
          _
        %v555 = vld [vmem:[%s397] sm:$0xff]
        %v556 = vpack.c.bf16 %v555, %v555
        %v557 = vld [vmem:[#allocation9] sm:$0xf]
        %v558 = vld [vmem:[#allocation9 + $0x4] sm:$0xf]
        %v559 = vld [vmem:[#allocation9 + $0x8] sm:$0xf]
        %v560 = vld [vmem:[#allocation9 + $0xc] sm:$0xf]
        %v561 = vld [vmem:[#allocation11] sm:$0x1]
        %v562 = vunpack.c.l.bf16 %v561
        %v563 = vlaneseq
        %v564 = vshrl.u32 %v563, 7
        %v565 = vsub.s32 0, %v564
        %v566 = vrot.slane %v562, %v565
        %v571 = vunpack.c.l.b16 %v557
        %v572 = vunpack.c.l.b16 %v558
        %v573 = vunpack.c.l.b16 %v559
        %v574 = vunpack.c.l.b16 %v560
        %v575 = vpack.c.b16 %v572, %v571
        %v576 = vpack.c.b16 %v574, %v573
        %vm579 = vcmask 261120
        %v581 = vsel %vm579, %v556, 0
        %583 = vmatprep.subr.bf16.mxu0 0
        %584 = vmatpush1.bf16.msra.mxu0 %v575
        %585 = vmatprep.subr.bf16.mxu0 0
        %586 = vmatpush1.bf16.msra.mxu0 %v576
        %587 = vmatprep.subr.bf16.mxu0 0
        %588 = vmatpush1.bf16.msra.mxu0 0
        %589 = vmatprep.subr.bf16.mxu0 0
        %590 = vmatpush1.bf16.msra.mxu0 0
        %591 = vmatprep.subr.bf16.mxu0 0
        %592 = vmatpush1.bf16.msra.mxu0 0
        %593 = vmatprep.subr.bf16.mxu0 0
        %594 = vmatpush1.bf16.msra.mxu0 0
        %595 = vmatprep.subr.bf16.mxu0 0
        %596 = vmatpush1.bf16.msra.mxu0 0
        %597 = vmatprep.subr.bf16.mxu0 0
        %598 = vmatpush1.bf16.msra.mxu0 0
        %599 = vmatprep.subr.bf16.mxu0 0
        %600 = vmatpush1.bf16.msra.mxu0 0
        %601 = vmatprep.subr.bf16.mxu0 0
        %602 = vmatpush1.bf16.msra.mxu0 0
        %603 = vmatprep.subr.bf16.mxu0 0
        %604 = vmatpush1.bf16.msra.mxu0 0
        %605 = vmatprep.subr.bf16.mxu0 0
        %606 = vmatpush1.bf16.msra.mxu0 0
        %607 = vmatprep.subr.bf16.mxu0 0
        %608 = vmatpush1.bf16.msra.mxu0 0
        %609 = vmatprep.subr.bf16.mxu0 0
        %610 = vmatpush1.bf16.msra.mxu0 0
        %611 = vmatprep.subr.bf16.mxu0 0
        %612 = vmatpush1.bf16.msra.mxu0 0
        %613 = vmatprep.subr.bf16.mxu0 0
        %614 = vmatpush1.bf16.msra.mxu0 0
        %615 = vmatprep.mubr.bf16.mxu0 0
        %616 = vmatmul.mubr.bf16.gmra.mrb[0].mxu0 %v581
        %v617 = vpop.f32.mrb[0].mxu0
        %v618 = vadd.f32 %v566, %v617
        %v619 = vpop.f32.mrb[0].mxu0
        %v620 = vpop.f32.mrb[0].mxu0
        %v621 = vpop.f32.mrb[0].mxu0
        %622 = vdwg.mxu0
        %v623 = vpack.c.bf16 %v618, %v618
        %v624 = vld [vmem:[#allocation2] sm:$0xf]
        %v625 = vld [vmem:[%s415] sm:$0xff]
        %v626 = vsub.f32 %v625, 1.0
        %v627 = vmul.f32 %v626, 1e+09
        %vm628 = vcmask 64512
        %v630 = vsel %vm628, %v623, 0
        %v633 = vsel %vm628, %v624, 0
        %635 = vmatprep.subr.bf16.mxu0 0
        %636 = vmatpush1.bf16.xpose.msra.mxu0 %v633
        %637 = vmatprep.subr.bf16.mxu0 0
        %638 = vmatpush1.bf16.xpose.msra.mxu0 0
        %639 = vmatprep.subr.bf16.mxu0 0
        %640 = vmatpush1.bf16.xpose.msra.mxu0 0
        %641 = vmatprep.subr.bf16.mxu0 0
        %642 = vmatpush1.bf16.xpose.msra.mxu0 0
        %643 = vmatprep.subr.bf16.mxu0 0
        %644 = vmatpush1.bf16.xpose.msra.mxu0 0
        %645 = vmatprep.subr.bf16.mxu0 0
        %646 = vmatpush1.bf16.xpose.msra.mxu0 0
        %647 = vmatprep.subr.bf16.mxu0 0
        %648 = vmatpush1.bf16.xpose.msra.mxu0 0
        %649 = vmatprep.subr.bf16.mxu0 0
        %650 = vmatpush1.bf16.xpose.msra.mxu0 0
        %651 = vmatprep.subr.bf16.mxu0 0
        %652 = vmatpush1.bf16.xpose.msra.mxu0 0
        %653 = vmatprep.subr.bf16.mxu0 0
        %654 = vmatpush1.bf16.xpose.msra.mxu0 0
        %655 = vmatprep.subr.bf16.mxu0 0
        %656 = vmatpush1.bf16.xpose.msra.mxu0 0
        %657 = vmatprep.subr.bf16.mxu0 0
        %658 = vmatpush1.bf16.xpose.msra.mxu0 0
        %659 = vmatprep.subr.bf16.mxu0 0
        %660 = vmatpush1.bf16.xpose.msra.mxu0 0
        %661 = vmatprep.subr.bf16.mxu0 0
        %662 = vmatpush1.bf16.xpose.msra.mxu0 0
        %663 = vmatprep.subr.bf16.mxu0 0
        %664 = vmatpush1.bf16.xpose.msra.mxu0 0
        %665 = vmatprep.subr.bf16.mxu0 0
        %666 = vmatpush1.bf16.xpose.msra.mxu0 0
        %667 = vmatprep.mubr.bf16.mxu0 0
        %668 = vmatmul.mubr.bf16.gmra.mrb[0].mxu0 %v630
        %v669 = vpop.f32.mrb[0].mxu0
        %v670 = vadd.f32 0.0, %v669
        %v671 = vpop.f32.mrb[0].mxu0
        %v672 = vpop.f32.mrb[0].mxu0
        %v673 = vpop.f32.mrb[0].mxu0
        %674 = vdwg.mxu0
        %v675 = vmul.f32 %v670, 0.35355338
        %v676 = vadd.f32 %v675, %v627
        %v677 = vsel %vm628, %v676, -inf
        %678 = vmax.xlane.f32.xlu0 %v677
        %v679 = vpop.xlane.xlu0 %678
        %v680 = vsub.f32 %v676, %v679
        %v681 = vmul.f32 %v680, 1.442695
        %v682 = vpow.pop %v681
        %v683 = vsel %vm628, %v682, 0.0
        %684 = vadd.xlane.f32.xlu0 %v683
        %v685 = vpop.xlane.xlu0 %684
        %v686 = vrcp.pop %v685
        %v687 = vmul.f32 %v682, %v686
        %688 = vst.msk [vmem:[%s478] sm:$0xff] %vm628, %v687
        %v689 = vpack.c.bf16 %v687, %v687
        %v691 = vunpack.c.l.b16 %v624
        %v692 = vpack.c.b16 %v691, %v691
        %693 = vrot.lane.b32.xlu0 %v692, 96
        %v694 = vpop.permute.xlu0 %693
        %v696 = vsel %vm628, %v689, 0
        %vm698 = vcmask 1043456
        %v700 = vsel %vm698, %v694, 0
        %702 = vmatprep.subr.bf16.mxu0 0
        %703 = vmatpush1.bf16.msra.mxu0 %v700
        %704 = vmatprep.subr.bf16.mxu0 0
        %705 = vmatpush1.bf16.msra.mxu0 0
        %706 = vmatprep.subr.bf16.mxu0 0
        %707 = vmatpush1.bf16.msra.mxu0 0
        %708 = vmatprep.subr.bf16.mxu0 0
        %709 = vmatpush1.bf16.msra.mxu0 0
        %710 = vmatprep.subr.bf16.mxu0 0
        %711 = vmatpush1.bf16.msra.mxu0 0
        %712 = vmatprep.subr.bf16.mxu0 0
        %713 = vmatpush1.bf16.msra.mxu0 0
        %714 = vmatprep.subr.bf16.mxu0 0
        %715 = vmatpush1.bf16.msra.mxu0 0
        %716 = vmatprep.subr.bf16.mxu0 0
        %717 = vmatpush1.bf16.msra.mxu0 0
        %718 = vmatprep.subr.bf16.mxu0 0
        %719 = vmatpush1.bf16.msra.mxu0 0
        %720 = vmatprep.subr.bf16.mxu0 0
        %721 = vmatpush1.bf16.msra.mxu0 0
        %722 = vmatprep.subr.bf16.mxu0 0
        %723 = vmatpush1.bf16.msra.mxu0 0
        %724 = vmatprep.subr.bf16.mxu0 0
        %725 = vmatpush1.bf16.msra.mxu0 0
        %726 = vmatprep.subr.bf16.mxu0 0
        %727 = vmatpush1.bf16.msra.mxu0 0
        %728 = vmatprep.subr.bf16.mxu0 0
        %729 = vmatpush1.bf16.msra.mxu0 0
        %730 = vmatprep.subr.bf16.mxu0 0
        %731 = vmatpush1.bf16.msra.mxu0 0
        %732 = vmatprep.subr.bf16.mxu0 0
        %733 = vmatpush1.bf16.msra.mxu0 0
        %734 = vmatprep.mubr.bf16.mxu0 0
        %735 = vmatmul.mubr.bf16.gmra.mrb[0].mxu0 %v696
        %v736 = vpop.f32.mrb[0].mxu0
        %v737 = vadd.f32 0.0, %v736
        %v738 = vpop.f32.mrb[0].mxu0
        %v739 = vpop.f32.mrb[0].mxu0
        %v740 = vpop.f32.mrb[0].mxu0
        %741 = vdwg.mxu0
        %743 = vrot.lane.b32.xlu0 %v623, 120
        %v744 = vpop.permute.xlu0 %743
        %745 = vrot.lane.b32.xlu0 %v692, 120
        %v746 = vpop.permute.xlu0 %745
        %v748 = vsel %vm628, %v744, 0
        %v751 = vsel %vm628, %v746, 0
        %753 = vmatprep.subr.bf16.mxu0 0
        %754 = vmatpush1.bf16.xpose.msra.mxu0 %v751
        %755 = vmatprep.subr.bf16.mxu0 0
        %756 = vmatpush1.bf16.xpose.msra.mxu0 0
        %757 = vmatprep.subr.bf16.mxu0 0
        %758 = vmatpush1.bf16.xpose.msra.mxu0 0
        %759 = vmatprep.subr.bf16.mxu0 0
        %760 = vmatpush1.bf16.xpose.msra.mxu0 0
        %761 = vmatprep.subr.bf16.mxu0 0
        %762 = vmatpush1.bf16.xpose.msra.mxu0 0
        %763 = vmatprep.subr.bf16.mxu0 0
        %764 = vmatpush1.bf16.xpose.msra.mxu0 0
        %765 = vmatprep.subr.bf16.mxu0 0
        %766 = vmatpush1.bf16.xpose.msra.mxu0 0
        %767 = vmatprep.subr.bf16.mxu0 0
        %768 = vmatpush1.bf16.xpose.msra.mxu0 0
        %769 = vmatprep.subr.bf16.mxu0 0
        %770 = vmatpush1.bf16.xpose.msra.mxu0 0
        %771 = vmatprep.subr.bf16.mxu0 0
        %772 = vmatpush1.bf16.xpose.msra.mxu0 0
        %773 = vmatprep.subr.bf16.mxu0 0
        %774 = vmatpush1.bf16.xpose.msra.mxu0 0
        %775 = vmatprep.subr.bf16.mxu0 0
        %776 = vmatpush1.bf16.xpose.msra.mxu0 0
        %777 = vmatprep.subr.bf16.mxu0 0
        %778 = vmatpush1.bf16.xpose.msra.mxu0 0
        %779 = vmatprep.subr.bf16.mxu0 0
        %780 = vmatpush1.bf16.xpose.msra.mxu0 0
        %781 = vmatprep.subr.bf16.mxu0 0
        %782 = vmatpush1.bf16.xpose.msra.mxu0 0
        %783 = vmatprep.subr.bf16.mxu0 0
        %784 = vmatpush1.bf16.xpose.msra.mxu0 0
        %785 = vmatprep.mubr.bf16.mxu0 0
        %786 = vmatmul.mubr.bf16.gmra.mrb[0].mxu0 %v748
        %v787 = vpop.f32.mrb[0].mxu0
        %v788 = vadd.f32 0.0, %v787
        %v789 = vpop.f32.mrb[0].mxu0
        %v790 = vpop.f32.mrb[0].mxu0
        %v791 = vpop.f32.mrb[0].mxu0
        %792 = vdwg.mxu0
        %v793 = vmul.f32 %v788, 0.35355338
        %v794 = vadd.f32 %v793, %v627
        %v795 = vsel %vm628, %v794, -inf
        %796 = vmax.xlane.f32.xlu0 %v795
        %v797 = vpop.xlane.xlu0 %796
        %v798 = vsub.f32 %v794, %v797
        %v799 = vmul.f32 %v798, 1.442695
        %v800 = vpow.pop %v799
        %v801 = vsel %vm628, %v800, 0.0
        %802 = vadd.xlane.f32.xlu0 %v801
        %v803 = vpop.xlane.xlu0 %802
        %v804 = vrcp.pop %v803
        %v805 = vmul.f32 %v800, %v804
        %s806 = scalar_lea.vmem %s478, 8 [#allocation16]
        %807 = vst.msk [vmem:[%s806] sm:$0xff] %vm628, %v805
        %v808 = vpack.c.bf16 %v805, %v805
        %809 = vrot.lane.b32.xlu0 %v692, 88
        %v810 = vpop.permute.xlu0 %809
        %v812 = vsel %vm628, %v808, 0
        %v815 = vsel %vm698, %v810, 0
        %817 = vmatprep.subr.bf16.mxu0 0
        %818 = vmatpush1.bf16.msra.mxu0 %v815
        %819 = vmatprep.subr.bf16.mxu0 0
        %820 = vmatpush1.bf16.msra.mxu0 0
        %821 = vmatprep.subr.bf16.mxu0 0
        %822 = vmatpush1.bf16.msra.mxu0 0
        %823 = vmatprep.subr.bf16.mxu0 0
        %824 = vmatpush1.bf16.msra.mxu0 0
        %825 = vmatprep.subr.bf16.mxu0 0
        %826 = vmatpush1.bf16.msra.mxu0 0
        %827 = vmatprep.subr.bf16.mxu0 0
        %828 = vmatpush1.bf16.msra.mxu0 0
        %829 = vmatprep.subr.bf16.mxu0 0
        %830 = vmatpush1.bf16.msra.mxu0 0
        %831 = vmatprep.subr.bf16.mxu0 0
        %832 = vmatpush1.bf16.msra.mxu0 0
        %833 = vmatprep.subr.bf16.mxu0 0
        %834 = vmatpush1.bf16.msra.mxu0 0
        %835 = vmatprep.subr.bf16.mxu0 0
        %836 = vmatpush1.bf16.msra.mxu0 0
        %837 = vmatprep.subr.bf16.mxu0 0
        %838 = vmatpush1.bf16.msra.mxu0 0
        %839 = vmatprep.subr.bf16.mxu0 0
        %840 = vmatpush1.bf16.msra.mxu0 0
        %841 = vmatprep.subr.bf16.mxu0 0
        %842 = vmatpush1.bf16.msra.mxu0 0
        %843 = vmatprep.subr.bf16.mxu0 0
        %844 = vmatpush1.bf16.msra.mxu0 0
        %845 = vmatprep.subr.bf16.mxu0 0
        %846 = vmatpush1.bf16.msra.mxu0 0
        %847 = vmatprep.subr.bf16.mxu0 0
        %848 = vmatpush1.bf16.msra.mxu0 0
        %849 = vmatprep.mubr.bf16.mxu0 0
        %850 = vmatmul.mubr.bf16.gmra.mrb[0].mxu0 %v812
        %v851 = vpop.f32.mrb[0].mxu0
        %v852 = vadd.f32 0.0, %v851
        %v853 = vpop.f32.mrb[0].mxu0
        %v854 = vpop.f32.mrb[0].mxu0
        %v855 = vpop.f32.mrb[0].mxu0
        %856 = vdwg.mxu0
        %857 = vrot.lane.b32.xlu0 %v623, 112
        %v858 = vpop.permute.xlu0 %857
        %859 = vrot.lane.b32.xlu0 %v692, 112
        %v860 = vpop.permute.xlu0 %859
        %v862 = vsel %vm628, %v858, 0
        %v865 = vsel %vm628, %v860, 0
        %867 = vmatprep.subr.bf16.mxu0 0
        %868 = vmatpush1.bf16.xpose.msra.mxu0 %v865
        %869 = vmatprep.subr.bf16.mxu0 0
        %870 = vmatpush1.bf16.xpose.msra.mxu0 0
        %871 = vmatprep.subr.bf16.mxu0 0
        %872 = vmatpush1.bf16.xpose.msra.mxu0 0
        %873 = vmatprep.subr.bf16.mxu0 0
        %874 = vmatpush1.bf16.xpose.msra.mxu0 0
        %875 = vmatprep.subr.bf16.mxu0 0
        %876 = vmatpush1.bf16.xpose.msra.mxu0 0
        %877 = vmatprep.subr.bf16.mxu0 0
        %878 = vmatpush1.bf16.xpose.msra.mxu0 0
        %879 = vmatprep.subr.bf16.mxu0 0
        %880 = vmatpush1.bf16.xpose.msra.mxu0 0
        %881 = vmatprep.subr.bf16.mxu0 0
        %882 = vmatpush1.bf16.xpose.msra.mxu0 0
        %883 = vmatprep.subr.bf16.mxu0 0
        %884 = vmatpush1.bf16.xpose.msra.mxu0 0
        %885 = vmatprep.subr.bf16.mxu0 0
        %886 = vmatpush1.bf16.xpose.msra.mxu0 0
        %887 = vmatprep.subr.bf16.mxu0 0
        %888 = vmatpush1.bf16.xpose.msra.mxu0 0
        %889 = vmatprep.subr.bf16.mxu0 0
        %890 = vmatpush1.bf16.xpose.msra.mxu0 0
        %891 = vmatprep.subr.bf16.mxu0 0
        %892 = vmatpush1.bf16.xpose.msra.mxu0 0
        %893 = vmatprep.subr.bf16.mxu0 0
        %894 = vmatpush1.bf16.xpose.msra.mxu0 0
        %895 = vmatprep.subr.bf16.mxu0 0
        %896 = vmatpush1.bf16.xpose.msra.mxu0 0
        %897 = vmatprep.subr.bf16.mxu0 0
        %898 = vmatpush1.bf16.xpose.msra.mxu0 0
        %899 = vmatprep.mubr.bf16.mxu0 0
        %900 = vmatmul.mubr.bf16.gmra.mrb[0].mxu0 %v862
        %v901 = vpop.f32.mrb[0].mxu0
        %v902 = vadd.f32 0.0, %v901
        %v903 = vpop.f32.mrb[0].mxu0
        %v904 = vpop.f32.mrb[0].mxu0
        %v905 = vpop.f32.mrb[0].mxu0
        %906 = vdwg.mxu0
        %v907 = vmul.f32 %v902, 0.35355338
        %v908 = vadd.f32 %v907, %v627
        %v909 = vsel %vm628, %v908, -inf
        %910 = vmax.xlane.f32.xlu0 %v909
        %v911 = vpop.xlane.xlu0 %910
        %v912 = vsub.f32 %v908, %v911
        %v913 = vmul.f32 %v912, 1.442695
        %v914 = vpow.pop %v913
        %v915 = vsel %vm628, %v914, 0.0
        %916 = vadd.xlane.f32.xlu0 %v915
        %v917 = vpop.xlane.xlu0 %916
        %v918 = vrcp.pop %v917
        %v919 = vmul.f32 %v914, %v918
        %s920 = scalar_lea.vmem %s478, 16 [#allocation16]
        %921 = vst.msk [vmem:[%s920] sm:$0xff] %vm628, %v919
        %v922 = vpack.c.bf16 %v919, %v919
        %923 = vrot.lane.b32.xlu0 %v692, 80
        %v924 = vpop.permute.xlu0 %923
        %v926 = vsel %vm628, %v922, 0
        %v929 = vsel %vm698, %v924, 0
        %931 = vmatprep.subr.bf16.mxu0 0
        %932 = vmatpush1.bf16.msra.mxu0 %v929
        %933 = vmatprep.subr.bf16.mxu0 0
        %934 = vmatpush1.bf16.msra.mxu0 0
        %935 = vmatprep.subr.bf16.mxu0 0
        %936 = vmatpush1.bf16.msra.mxu0 0
        %937 = vmatprep.subr.bf16.mxu0 0
        %938 = vmatpush1.bf16.msra.mxu0 0
        %939 = vmatprep.subr.bf16.mxu0 0
        %940 = vmatpush1.bf16.msra.mxu0 0
        %941 = vmatprep.subr.bf16.mxu0 0
        %942 = vmatpush1.bf16.msra.mxu0 0
        %943 = vmatprep.subr.bf16.mxu0 0
        %944 = vmatpush1.bf16.msra.mxu0 0
        %945 = vmatprep.subr.bf16.mxu0 0
        %946 = vmatpush1.bf16.msra.mxu0 0
        %947 = vmatprep.subr.bf16.mxu0 0
        %948 = vmatpush1.bf16.msra.mxu0 0
        %949 = vmatprep.subr.bf16.mxu0 0
        %950 = vmatpush1.bf16.msra.mxu0 0
        %951 = vmatprep.subr.bf16.mxu0 0
        %952 = vmatpush1.bf16.msra.mxu0 0
        %953 = vmatprep.subr.bf16.mxu0 0
        %954 = vmatpush1.bf16.msra.mxu0 0
        %955 = vmatprep.subr.bf16.mxu0 0
        %956 = vmatpush1.bf16.msra.mxu0 0
        %957 = vmatprep.subr.bf16.mxu0 0
        %958 = vmatpush1.bf16.msra.mxu0 0
        %959 = vmatprep.subr.bf16.mxu0 0
        %960 = vmatpush1.bf16.msra.mxu0 0
        %961 = vmatprep.subr.bf16.mxu0 0
        %962 = vmatpush1.bf16.msra.mxu0 0
        %963 = vmatprep.mubr.bf16.mxu0 0
        %964 = vmatmul.mubr.bf16.gmra.mrb[0].mxu0 %v926
        %v965 = vpop.f32.mrb[0].mxu0
        %v966 = vadd.f32 0.0, %v965
        %v967 = vpop.f32.mrb[0].mxu0
        %v968 = vpop.f32.mrb[0].mxu0
        %v969 = vpop.f32.mrb[0].mxu0
        %970 = vdwg.mxu0
        %971 = vrot.lane.b32.xlu0 %v623, 104
        %v972 = vpop.permute.xlu0 %971
        %973 = vrot.lane.b32.xlu0 %v692, 104
        %v974 = vpop.permute.xlu0 %973
        %v976 = vsel %vm628, %v972, 0
        %v979 = vsel %vm628, %v974, 0
        %981 = vmatprep.subr.bf16.mxu0 0
        %982 = vmatpush1.bf16.xpose.msra.mxu0 %v979
        %983 = vmatprep.subr.bf16.mxu0 0
        %984 = vmatpush1.bf16.xpose.msra.mxu0 0
        %985 = vmatprep.subr.bf16.mxu0 0
        %986 = vmatpush1.bf16.xpose.msra.mxu0 0
        %987 = vmatprep.subr.bf16.mxu0 0
        %988 = vmatpush1.bf16.xpose.msra.mxu0 0
        %989 = vmatprep.subr.bf16.mxu0 0
        %990 = vmatpush1.bf16.xpose.msra.mxu0 0
        %991 = vmatprep.subr.bf16.mxu0 0
        %992 = vmatpush1.bf16.xpose.msra.mxu0 0
        %993 = vmatprep.subr.bf16.mxu0 0
        %994 = vmatpush1.bf16.xpose.msra.mxu0 0
        %995 = vmatprep.subr.bf16.mxu0 0
        %996 = vmatpush1.bf16.xpose.msra.mxu0 0
        %997 = vmatprep.subr.bf16.mxu0 0
        %998 = vmatpush1.bf16.xpose.msra.mxu0 0
        %999 = vmatprep.subr.bf16.mxu0 0
        %1000 = vmatpush1.bf16.xpose.msra.mxu0 0
        %1001 = vmatprep.subr.bf16.mxu0 0
        %1002 = vmatpush1.bf16.xpose.msra.mxu0 0
        %1003 = vmatprep.subr.bf16.mxu0 0
        %1004 = vmatpush1.bf16.xpose.msra.mxu0 0
        %1005 = vmatprep.subr.bf16.mxu0 0
        %1006 = vmatpush1.bf16.xpose.msra.mxu0 0
        %1007 = vmatprep.subr.bf16.mxu0 0
        %1008 = vmatpush1.bf16.xpose.msra.mxu0 0
        %1009 = vmatprep.subr.bf16.mxu0 0
        %1010 = vmatpush1.bf16.xpose.msra.mxu0 0
        %1011 = vmatprep.subr.bf16.mxu0 0
        %1012 = vmatpush1.bf16.xpose.msra.mxu0 0
        %1013 = vmatprep.mubr.bf16.mxu0 0
        %1014 = vmatmul.mubr.bf16.gmra.mrb[0].mxu0 %v976
        %v1015 = vpop.f32.mrb[0].mxu0
        %v1016 = vadd.f32 0.0, %v1015
        %v1017 = vpop.f32.mrb[0].mxu0
        %v1018 = vpop.f32.mrb[0].mxu0
        %v1019 = vpop.f32.mrb[0].mxu0
        %1020 = vdwg.mxu0
        %v1021 = vmul.f32 %v1016, 0.35355338
        %v1022 = vadd.f32 %v1021, %v627
        %v1023 = vsel %vm628, %v1022, -inf
        %1024 = vmax.xlane.f32.xlu0 %v1023
        %v1025 = vpop.xlane.xlu0 %1024
        %v1026 = vsub.f32 %v1022, %v1025
        %v1027 = vmul.f32 %v1026, 1.442695
        %v1028 = vpow.pop %v1027
        %v1029 = vsel %vm628, %v1028, 0.0
        %1030 = vadd.xlane.f32.xlu0 %v1029
        %v1031 = vpop.xlane.xlu0 %1030
        %v1032 = vrcp.pop %v1031
        %v1033 = vmul.f32 %v1028, %v1032
        %s1034 = scalar_lea.vmem %s478, 24 [#allocation16]
        %1035 = vst.msk [vmem:[%s1034] sm:$0xff] %vm628, %v1033
        %v1036 = vpack.c.bf16 %v1033, %v1033
        %1037 = vrot.lane.b32.xlu0 %v692, 72
        %v1038 = vpop.permute.xlu0 %1037
        %v1040 = vsel %vm628, %v1036, 0
        %v1043 = vsel %vm698, %v1038, 0
        %1045 = vmatprep.subr.bf16.mxu0 0
        %1046 = vmatpush1.bf16.msra.mxu0 %v1043
        %1047 = vmatprep.subr.bf16.mxu0 0
        %1048 = vmatpush1.bf16.msra.mxu0 0
        %1049 = vmatprep.subr.bf16.mxu0 0
        %1050 = vmatpush1.bf16.msra.mxu0 0
        %1051 = vmatprep.subr.bf16.mxu0 0
        %1052 = vmatpush1.bf16.msra.mxu0 0
        %1053 = vmatprep.subr.bf16.mxu0 0
        %1054 = vmatpush1.bf16.msra.mxu0 0
        %1055 = vmatprep.subr.bf16.mxu0 0
        %1056 = vmatpush1.bf16.msra.mxu0 0
        %1057 = vmatprep.subr.bf16.mxu0 0
        %1058 = vmatpush1.bf16.msra.mxu0 0
        %1059 = vmatprep.subr.bf16.mxu0 0
        %1060 = vmatpush1.bf16.msra.mxu0 0
        %1061 = vmatprep.subr.bf16.mxu0 0
        %1062 = vmatpush1.bf16.msra.mxu0 0
        %1063 = vmatprep.subr.bf16.mxu0 0
        %1064 = vmatpush1.bf16.msra.mxu0 0
        %1065 = vmatprep.subr.bf16.mxu0 0
        %1066 = vmatpush1.bf16.msra.mxu0 0
        %1067 = vmatprep.subr.bf16.mxu0 0
        %1068 = vmatpush1.bf16.msra.mxu0 0
        %1069 = vmatprep.subr.bf16.mxu0 0
        %1070 = vmatpush1.bf16.msra.mxu0 0
        %1071 = vmatprep.subr.bf16.mxu0 0
        %1072 = vmatpush1.bf16.msra.mxu0 0
        %1073 = vmatprep.subr.bf16.mxu0 0
        %1074 = vmatpush1.bf16.msra.mxu0 0
        %1075 = vmatprep.subr.bf16.mxu0 0
        %1076 = vmatpush1.bf16.msra.mxu0 0
        %1077 = vmatprep.mubr.bf16.mxu0 0
        %1078 = vmatmul.mubr.bf16.gmra.mrb[0].mxu0 %v1040
        %v1079 = vpop.f32.mrb[0].mxu0
        %v1080 = vadd.f32 0.0, %v1079
        %v1081 = vpop.f32.mrb[0].mxu0
        %v1082 = vpop.f32.mrb[0].mxu0
        %v1083 = vpop.f32.mrb[0].mxu0
        %1084 = vdwg.mxu0
        %1086 = vrot.lane.b32.xlu0 %v852, 8
        %v1087 = vpop.permute.xlu0 %1086
        %1090 = vrot.lane.b32.xlu0 %v966, 16
        %v1091 = vpop.permute.xlu0 %1090
        %1094 = vrot.lane.b32.xlu0 %v1080, 24
        %v1095 = vpop.permute.xlu0 %1094
        %v1097 = vsel %vm628, %v737, %v1087
        %vm1098 = vcmask 130048
        %v1099 = vsel %vm1098, %v1097, %v1091
        %vm1100 = vcmask 195584
        %v1101 = vsel %vm1100, %v1099, %v1095
        %v1102 = vpack.c.bf16 %v1101, %v1101
        %vm1103 = vcmask 257024
        %1104 = vst.msk [vmem:[%s471] sm:$0xf] %vm1103, %v1102
        %s1105 = sand.u32 %s222, 1
        %s1106 = scalar_lea.sflag [#allocation5], %s1105
        %s1107 = sand.u32 %s222, 1
        %s1108 = smul.addr %s1107, 4
        %s1109 = scalar_lea.vmem [#allocation15], %s1108
        %s1110 = sand.u32 %s250, 1
        %s1111 = scalar_lea.sflag [#allocation17], %s1110
        %s1112 = sand.u32 %s250, 1
        %s1113 = smul.addr %s1112, 32
        %s1114 = scalar_lea.vmem [#allocation16], %s1113
        // Predicated region
        $region81: #{decoder_block.5} parent=47 // pred_check
          %p1115 = pneg %p232
        $region82: #{decoder_block.5} parent=47 // pred_check_branch
          %1117 = sbr.rel (%p1115) target = $region84
        $region83: #{decoder_block.5} parent=47 // pred_region
          %s1119 = ssub.s32 64, 64
          %1120 = vsyncadd %s1106, %s1119
          %s1121 = sadd.s32 %s39, %s38
          %s1122 = smul.addr %s1121, 64
          %s1123 = scalar_lea.hbm %s7, %s1122
          %s1125 = sshll.u32 %s1109, 4
          %s1126 = int_to_ptr.vmem [resolvable:$true] %s1125
          %1128 = dma.vmem_to_hbm [thread:$0]  %s1126, 64, %s1123, %s1106
        $region84: #{decoder_block.5} parent=47 // pred_fallthru
          _
        // Predicated region
        $region85: #{decoder_block.5} parent=47 // pred_check
          %p1129 = pneg %p260
        $region86: #{decoder_block.5} parent=47 // pred_check_branch
          %1131 = sbr.rel (%p1129) target = $region88
        $region87: #{decoder_block.5} parent=47 // pred_region
          %s1133 = ssub.s32 512, 512
          %1134 = vsyncadd %s1111, %s1133
          %s1135 = smul.addr %s38, 4
          %s1136 = sadd.s32 %s39, %s1135
          %s1137 = smul.addr %s1136, 128
          %s1138 = scalar_lea.hbm %s8, %s1137
          %s1139 = sshll.u32 %s1114, 4
          %s1140 = int_to_ptr.vmem [resolvable:$true] %s1139
          %1145 = dma.vmem_to_hbm [thread:$0]  %s1140, 512, %s1138, %s1111, 128, 128, 8
        $region88: #{decoder_block.5} parent=47 // pred_fallthru
          _
      $region48: #{decoder_block.5} parent=5 // pred_fallthru
        _
      %p1146 = scmp.le.s32.totalorder 2, %s29
      // Predicated region
      $region89: #{decoder_block.5} parent=5 // pred_check
        %p1147 = pneg %p1146
      $region90: #{decoder_block.5} parent=5 // pred_check_branch
        %1149 = sbr.rel (%p1147) target = $region92
      $region91: #{decoder_block.5} parent=5 // pred_region
        %s1150 = ssub.s32 %s29, 2
        // Predicated region
        $region93: #{decoder_block.5} parent=91 // pred_check
          %p1151 = pneg %p238
        $region94: #{decoder_block.5} parent=91 // pred_check_branch
          %1153 = sbr.rel (%p1151) target = $region96
        $region95: #{decoder_block.5} parent=91 // pred_region
          %s1154 = sand.u32 %s223, 1
          %s1155 = scalar_lea.sflag [#allocation5], %s1154
          %s1156 = sand.u32 %s223, 1
          %s1157 = smul.addr %s1156, 4
          %s1158 = scalar_lea.vmem [#allocation15], %s1157
          %1159 = dma.done %s1155, 64
        $region96: #{decoder_block.5} parent=91 // pred_fallthru
          _
        // Predicated region
        $region97: #{decoder_block.5} parent=91 // pred_check
          %p1160 = pneg %p266
        $region98: #{decoder_block.5} parent=91 // pred_check_branch
          %1162 = sbr.rel (%p1160) target = $region100
        $region99: #{decoder_block.5} parent=91 // pred_region
          %s1163 = sand.u32 %s251, 1
          %s1164 = scalar_lea.sflag [#allocation17], %s1163
          %s1165 = sand.u32 %s251, 1
          %s1166 = smul.addr %s1165, 32
          %s1167 = scalar_lea.vmem [#allocation16], %s1166
          %1168 = dma.done %s1164, 512
        $region100: #{decoder_block.5} parent=91 // pred_fallthru
          _
      $region92: #{decoder_block.5} parent=5 // pred_fallthru
        _
    $region6: #{decoder_block.5} parent=1 // loop_footer
      %s33 = sadd.s32 1, %s29
    $region7: #{decoder_block.5} parent=1 // loop_footer_branch
      %28 = sbr.rel target = $region3
    $region8: #{decoder_block.5} parent=1 // loop_exit
      _
    %1169 = vsyncpa [#allocation4], 1
    %s1170 = scalar_lea.sflag [#allocation4], 1
    %1171 = vsyncpa %s1170, 1
    %1172 = vsyncpa [#allocation7], 1
    %s1173 = scalar_lea.sflag [#allocation7], 1
    %1174 = vsyncpa %s1173, 1
    %1175 = vsyncpa [#allocation10], 1
    %1176 = vsyncpa [#allocation13], 1
    %1177 = vsyncpa [#allocation5], 1
    %s1178 = scalar_lea.sflag [#allocation5], 1
    %1179 = vsyncpa %s1178, 1
    %1180 = vsyncpa [#allocation17], 1
    %s1181 = scalar_lea.sflag [#allocation17], 1
    %1182 = vsyncpa %s1181, 1

</llo_original>
